<compile_context>
chip_gen: v7x
topology: tpu7x:2x2x1
jax: 0.10.0
libtpu: 0.0.40
codegen_flags: <defaults>
</compile_context>

<pallas_src>
import jax
import jax.numpy as jnp
from jax.experimental import pallas as pl
from jax.experimental.pallas import tpu as pltpu

# ---- hyperparameters (ExpertLayer defaults at small scale) ----
D_MODEL = 32
D_FF = 4 * D_MODEL            # 128
N_EXPERTS = 8
TOP_K = 2
GATE_TEMPERATURE = 1.0
LOAD_BALANCE_WEIGHT = 0.01

BATCH = 2
SEQ = 8

EF = N_EXPERTS * D_FF         # 1024

_INV_SQRT2 = 0.7071067811865476


def _recip(x):
    """EUP approximate reciprocal + one Newton-Raphson step (~f32 accuracy)."""
    r = pl.reciprocal(x, approx=True)
    return r * (2.0 - x * r)


def _gelu_exact(h):
    """PyTorch nn.GELU() default: 0.5*h*(1+erf(h/sqrt(2))).

    erf via Abramowitz & Stegun 7.1.26 (|err| < 1.5e-7).  Structured so the
    peak number of simultaneously-live (T, E*F)-sized temporaries stays small
    (h, ax, t, poly) and the sign is taken from h (no extra `u` live range).
    """
    p = 0.3275911
    a1, a2, a3, a4, a5 = (0.254829592, -0.284496736, 1.421413741,
                          -1.453152027, 1.061405429)
    ax = jnp.abs(h) * _INV_SQRT2
    t = _recip(1.0 + p * ax)                       # EUP + Newton
    poly = ((((a5 * t + a4) * t + a3) * t + a2) * t + a1) * t
    erf_abs = 1.0 - poly * jnp.exp(-ax * ax)       # exp on the EUP
    erf = jnp.where(h >= 0.0, erf_abs, -erf_abs)
    return 0.5 * h * (1.0 + erf)


def moe_kernel(x_ref, wg_ref, w1_ref, b1_ref, w2_ref, route_ref, o_ref, aux_ref):
    x = x_ref[...]                                              # (T, D) f32
    t_rows = x.shape[0]

    # ---- gate: linear (no bias, f32) -> temperature -> softmax ----
    logits = jnp.dot(x, wg_ref[...], preferred_element_type=jnp.float32)
    logits = logits * (1.0 / GATE_TEMPERATURE)
    m = jnp.max(logits, axis=-1, keepdims=True)
    ex = jnp.exp(logits - m)
    probs = ex * _recip(jnp.sum(ex, axis=-1, keepdims=True))    # (T, E)

    # ---- load-balance aux loss (matches torch: tokens_per_expert = probs>0) ----
    prob_sum = jnp.sum(probs, axis=0, keepdims=True)            # (1, E)
    pos_sum = jnp.sum(jnp.where(probs > 0.0, 1.0, 0.0),
                      axis=0, keepdims=True)                    # (1, E)
    aux_ref[0] = jnp.sum(prob_sum * pos_sum) * (
        float(N_EXPERTS) / float(t_rows * t_rows))

    # ---- top-2 selection + renormalization as dense per-expert weights ----
    eidx = jax.lax.broadcasted_iota(jnp.int32, probs.shape, 1)  # (T, E)
    p1 = jnp.max(probs, axis=-1, keepdims=True)
    i1 = jnp.min(jnp.where(probs == p1, eidx, N_EXPERTS),
                 axis=-1, keepdims=True)
    masked = jnp.where(eidx == i1, -jnp.inf, probs)
    p2 = jnp.max(masked, axis=-1, keepdims=True)
    i2 = jnp.min(jnp.where(masked == p2, eidx, N_EXPERTS),
                 axis=-1, keepdims=True)
    inv_denom = _recip(p1 + p2)
    route_w = jnp.where(eidx == i1, p1 * inv_denom,
                        jnp.where(eidx == i2, p2 * inv_denom, 0.0))  # (T, E) f32

    # ---- fused experts: bf16 weight bank, f32 accumulation ----
    h = jnp.dot(x.astype(jnp.bfloat16), w1_ref[...],
                preferred_element_type=jnp.float32)             # (T, E*F) f32
    h = h + b1_ref[...]
    g = _gelu_exact(h)                                          # (T, E*F) f32

    # Merged K=8 routing matmul: [expand | b2] in one operand.  Computed after
    # the gelu so route_big never overlaps the erf temporaries (vreg pressure).
    r = jnp.dot(route_w.astype(jnp.bfloat16), route_ref[...],
                preferred_element_type=jnp.float32)             # (T, E*F + D)
    route_big = r[:, :EF]                                       # (T, E*F)
    out_bias = r[:, EF:]                                        # (T, D)

    prod = (g * route_big).astype(jnp.bfloat16)                 # bf16 LHS for MXU
    out = jnp.dot(prod, w2_ref[...], preferred_element_type=jnp.float32)
    o_ref[...] = out + out_bias


def pack_params(params):
    """One-time wrapper-side repack: fuse expert weights, bf16 the big banks."""
    w1 = jnp.transpose(params["w1"], (1, 0, 2)).reshape(D_MODEL, EF)   # (D, E*F)
    w2 = params["w2"].reshape(EF, D_MODEL)                             # (E*F, D)
    expand = jnp.repeat(jnp.eye(N_EXPERTS, dtype=jnp.float32), D_FF, axis=1)
    route = jnp.concatenate([expand, params["b2"]], axis=1)            # (E, E*F + D)
    return dict(
        wg=params["wg"].astype(jnp.float32),                  # gate stays f32
        w1=w1.astype(jnp.bfloat16),
        b1=params["b1"].reshape(1, EF).astype(jnp.float32),
        w2=w2.astype(jnp.bfloat16),
        route=route.astype(jnp.bfloat16),
    )


def expert_layer_forward(x, packed):
    """x: [batch, seq, d_model] float32. Returns dict(output, load_balance_loss)."""
    B, S, D = x.shape
    T = B * S
    assert T % 8 == 0, "token count must be a multiple of 8 (sublane tiling)"
    x_flat = x.reshape(T, D)

    # Single token tile (grid = 1 step): the aux-loss reduction assumes one
    # tile, and at T=16 extra grid steps are pure per-step overhead.
    tile_t = T

    out, aux = pl.pallas_call(
        moe_kernel,
        out_shape=(jax.ShapeDtypeStruct((T, D), jnp.float32),
                   jax.ShapeDtypeStruct((1,), jnp.float32)),
        grid=(T // tile_t,),
        in_specs=[
            pl.BlockSpec((tile_t, D), lambda i: (i, 0)),            # x
            pl.BlockSpec((D, N_EXPERTS), lambda i: (0, 0)),         # gate W (f32)
            pl.BlockSpec((D, EF), lambda i: (0, 0)),                # W1 bank (bf16)
            pl.BlockSpec((1, EF), lambda i: (0, 0)),                # b1 (f32)
            pl.BlockSpec((EF, D), lambda i: (0, 0)),                # W2 bank (bf16)
            pl.BlockSpec((N_EXPERTS, EF + D), lambda i: (0, 0)),    # [expand|b2] (bf16)
        ],
        out_specs=(
            pl.BlockSpec((tile_t, D), lambda i: (i, 0)),
            pl.BlockSpec((1,), lambda i: (0,),
                         memory_space=pltpu.MemorySpace.SMEM),
        ),
        compiler_params=pltpu.CompilerParams(
            dimension_semantics=("arbitrary",)),
    )(x_flat, packed["wg"], packed["w1"], packed["b1"],
      packed["w2"], packed["route"])

    return {"output": out.reshape(B, S, D),
            "load_balance_loss": aux[0] * LOAD_BALANCE_WEIGHT}


def init_params(key):
    """Deterministic synthetic parameters matching the PyTorch module's shapes."""
    ks = jax.random.split(key, 5)

    def uni(k, shape, fan_in):
        bound = 1.0 / (fan_in ** 0.5)
        return jax.random.uniform(k, shape, jnp.float32, -bound, bound)

    return dict(
        wg=0.1 * jax.random.normal(ks[0], (D_MODEL, N_EXPERTS), jnp.float32),
        w1=uni(ks[1], (N_EXPERTS, D_MODEL, D_FF), D_MODEL),
        b1=uni(ks[2], (N_EXPERTS, D_FF), D_MODEL),
        w2=uni(ks[3], (N_EXPERTS, D_FF, D_MODEL), D_FF),
        b2=uni(ks[4], (N_EXPERTS, D_MODEL), D_FF),
    )


def reference_forward(x, params):
    """Plain-JAX f32 reference mirroring the PyTorch forward (for validation)."""
    B, S, D = x.shape
    xf = x.reshape(-1, D)
    logits = (xf @ params["wg"]) / GATE_TEMPERATURE
    probs = jax.nn.softmax(logits, axis=-1)
    topv, topi = jax.lax.top_k(probs, TOP_K)
    topv = topv / topv.sum(axis=-1, keepdims=True)
    out = jnp.zeros_like(xf)
    for e in range(N_EXPERTS):
        h = xf @ params["w1"][e] + params["b1"][e]
        h = 0.5 * h * (1.0 + jax.scipy.special.erf(h * _INV_SQRT2))
        oe = h @ params["w2"][e] + params["b2"][e]
        w = jnp.sum(jnp.where(topi == e, topv, 0.0), axis=-1, keepdims=True)
        out = out + w * oe
    gp = probs.reshape(B, S, N_EXPERTS)
    prob_mean = gp.mean(axis=(0, 1))
    tpe = (gp > 0).astype(jnp.float32).mean(axis=(0, 1))
    aux = jnp.sum(prob_mean * tpe) * N_EXPERTS
    return {"output": out.reshape(B, S, D),
            "load_balance_loss": aux * LOAD_BALANCE_WEIGHT}


if __name__ == "__main__":
    key = jax.random.PRNGKey(0)
    pkey, xkey = jax.random.split(key)
    params = init_params(pkey)
    packed = pack_params(params)
    x = jax.random.normal(xkey, (BATCH, SEQ, D_MODEL), jnp.float32)

    result = expert_layer_forward(x, packed)
    jax.block_until_ready(result["output"])
    jax.block_until_ready(result["load_balance_loss"])

    ref = reference_forward(x, params)
    # Tolerances cover bf16 weight/activation quantization of the expert banks
    # (~0.5% rel) plus the A&S erf approximation; the gate / softmax / top-2
    # routing path is f32 with Newton-refined reciprocals, so routing decisions
    # match the reference exactly and real routing/fusion bugs produce O(1)
    # errors that still trip these checks.
    assert jnp.allclose(result["output"], ref["output"], rtol=2e-2, atol=3e-3), \
        "output mismatch vs reference"
    assert jnp.allclose(result["load_balance_loss"], ref["load_balance_loss"],
                        rtol=1e-3, atol=1e-6), "aux loss mismatch vs reference"

    print("KERNEL_OK")
</pallas_src>

<mosaic_0001>
module attributes {stable_mosaic.version = 11 : i64} {
  func.func @moe_kernel(%arg0: i32, %arg1: memref<16x32xf32, #tpu.memory_space<vmem>>, %arg2: memref<32x8xf32, #tpu.memory_space<vmem>>, %arg3: memref<32x1024xbf16, #tpu.memory_space<vmem>>, %arg4: memref<1x1024xf32, #tpu.memory_space<vmem>>, %arg5: memref<1024x32xbf16, #tpu.memory_space<vmem>>, %arg6: memref<8x1056xbf16, #tpu.memory_space<vmem>>, %arg7: memref<16x32xf32, #tpu.memory_space<vmem>>, %arg8: memref<1xf32, #tpu.memory_space<smem>>) attributes {dimension_semantics = [#tpu.dimension_semantics<arbitrary>], iteration_bounds = array<i64: 1>, scalar_prefetch = 0 : i64, scratch_operands = 0 : i64, tpu.core_type = #tpu.core_type<tc>, window_params = [{transform_indices = @transform_0, window_bounds = array<i64: 16, 32>}, {pipeline_mode = #tpu.pipeline_mode<synchronous>, transform_indices = @transform_1, window_bounds = array<i64: 32, 8>}, {pipeline_mode = #tpu.pipeline_mode<synchronous>, transform_indices = @transform_2, window_bounds = array<i64: 32, 1024>}, {pipeline_mode = #tpu.pipeline_mode<synchronous>, transform_indices = @transform_3, window_bounds = array<i64: 1, 1024>}, {pipeline_mode = #tpu.pipeline_mode<synchronous>, transform_indices = @transform_4, window_bounds = array<i64: 1024, 32>}, {pipeline_mode = #tpu.pipeline_mode<synchronous>, transform_indices = @transform_5, window_bounds = array<i64: 8, 1056>}, {transform_indices = @transform_6, window_bounds = array<i64: 16, 32>}, {transform_indices = @transform_7, window_bounds = array<i64: 1>}]} {
    %c0 = arith.constant 0 : index
    %c0_0 = arith.constant 0 : index
    %0 = vector.load %arg1[%c0, %c0_0] : memref<16x32xf32, #tpu.memory_space<vmem>>, vector<16x32xf32>
    %c0_1 = arith.constant 0 : index
    %c0_2 = arith.constant 0 : index
    %1 = vector.load %arg2[%c0_1, %c0_2] : memref<32x8xf32, #tpu.memory_space<vmem>>, vector<32x8xf32>
    %cst = arith.constant dense<0.000000e+00> : vector<16x8xf32>
    %2 = tpu.matmul %0, %1, %cst {dimension_numbers = #tpu.dot_dimension_numbers<[1], [0], [0], [1], [0, 0, 1, 1], [], []>} : vector<16x32xf32>, vector<32x8xf32>, vector<16x8xf32> -> vector<16x8xf32>
    %cst_3 = arith.constant 1.000000e+00 : f32
    %3 = vector.broadcast %cst_3 : f32 to vector<16x8xf32>
    %4 = arith.mulf %2, %3 : vector<16x8xf32>
    %cst_4 = arith.constant dense<0xFF800000> : vector<16xf32>
    %5 = vector.multi_reduction <maximumf>, %4, %cst_4 [1] : vector<16x8xf32> to vector<16xf32>
    %6 = vector.shape_cast %5 : vector<16xf32> to vector<16x1xf32>
    %7 = vector.broadcast %6 : vector<16x1xf32> to vector<16x8xf32>
    %8 = arith.subf %4, %7 : vector<16x8xf32>
    %9 = math.exp %8 : vector<16x8xf32>
    %cst_5 = arith.constant dense<0.000000e+00> : vector<16xf32>
    %10 = vector.multi_reduction <add>, %9, %cst_5 [1] : vector<16x8xf32> to vector<16xf32>
    %11 = vector.shape_cast %10 : vector<16xf32> to vector<16x1xf32>
    %12 = tpu.reciprocal %11 {approx = true} : vector<16x1xf32> -> vector<16x1xf32>
    %13 = arith.mulf %11, %12 : vector<16x1xf32>
    %cst_6 = arith.constant 2.000000e+00 : f32
    %14 = vector.broadcast %cst_6 : f32 to vector<16x1xf32>
    %15 = arith.subf %14, %13 : vector<16x1xf32>
    %16 = arith.mulf %12, %15 : vector<16x1xf32>
    %17 = vector.broadcast %16 : vector<16x1xf32> to vector<16x8xf32>
    %18 = arith.mulf %9, %17 : vector<16x8xf32>
    %cst_7 = arith.constant dense<0.000000e+00> : vector<8xf32>
    %19 = vector.multi_reduction <add>, %18, %cst_7 [0] : vector<16x8xf32> to vector<8xf32>
    %20 = vector.shape_cast %19 : vector<8xf32> to vector<1x8xf32>
    %cst_8 = arith.constant 0.000000e+00 : f32
    %21 = vector.broadcast %cst_8 : f32 to vector<16x8xf32>
    %22 = arith.cmpf ogt, %18, %21 : vector<16x8xf32>
    %cst_9 = arith.constant 1.000000e+00 : f32
    %cst_10 = arith.constant 0.000000e+00 : f32
    %23 = vector.broadcast %cst_9 : f32 to vector<16x8xf32>
    %24 = vector.broadcast %cst_10 : f32 to vector<16x8xf32>
    %25 = arith.select %22, %23, %24 : vector<16x8xi1>, vector<16x8xf32>
    %cst_11 = arith.constant dense<0.000000e+00> : vector<8xf32>
    %26 = vector.multi_reduction <add>, %25, %cst_11 [0] : vector<16x8xf32> to vector<8xf32>
    %27 = vector.shape_cast %26 : vector<8xf32> to vector<1x8xf32>
    %28 = arith.mulf %20, %27 : vector<1x8xf32>
    %29 = vector.shape_cast %28 : vector<1x8xf32> to vector<1x1x8xf32>
    %cst_12 = arith.constant dense<0.000000e+00> : vector<1xf32>
    %30 = vector.multi_reduction <add>, %29, %cst_12 [1, 2] : vector<1x1x8xf32> to vector<1xf32>
    %31 = vector.shape_cast %30 : vector<1xf32> to vector<1x1x1xf32>
    %32 = vector.extract %31[0, 0, 0] : f32 from vector<1x1x1xf32>
    %cst_13 = arith.constant 3.125000e-02 : f32
    %33 = arith.mulf %32, %cst_13 : f32
    %c0_14 = arith.constant 0 : index
    %34 = memref.load %arg8[%c0_14] : memref<1xf32, #tpu.memory_space<smem>>
    memref.store %33, %arg8[%c0_14] : memref<1xf32, #tpu.memory_space<smem>>
    %35 = tpu.iota {dimensions = array<i32: 1>} : vector<16x8xi32>
    %cst_15 = arith.constant dense<0xFF800000> : vector<16xf32>
    %36 = vector.multi_reduction <maximumf>, %18, %cst_15 [1] : vector<16x8xf32> to vector<16xf32>
    %37 = vector.shape_cast %36 : vector<16xf32> to vector<16x1xf32>
    %38 = vector.broadcast %37 : vector<16x1xf32> to vector<16x8xf32>
    %39 = arith.cmpf oeq, %18, %38 : vector<16x8xf32>
    %c8_i32 = arith.constant 8 : i32
    %40 = vector.broadcast %c8_i32 : i32 to vector<16x8xi32>
    %41 = arith.select %39, %35, %40 : vector<16x8xi1>, vector<16x8xi32>
    %cst_16 = arith.constant dense<2147483647> : vector<16xi32>
    %42 = vector.multi_reduction <minsi>, %41, %cst_16 [1] : vector<16x8xi32> to vector<16xi32>
    %43 = vector.shape_cast %42 : vector<16xi32> to vector<16x1xi32>
    %44 = vector.broadcast %43 : vector<16x1xi32> to vector<16x8xi32>
    %45 = arith.cmpi eq, %35, %44 : vector<16x8xi32>
    %cst_17 = arith.constant 0xFF800000 : f32
    %46 = vector.broadcast %cst_17 : f32 to vector<16x8xf32>
    %47 = arith.select %45, %46, %18 : vector<16x8xi1>, vector<16x8xf32>
    %cst_18 = arith.constant dense<0xFF800000> : vector<16xf32>
    %48 = vector.multi_reduction <maximumf>, %47, %cst_18 [1] : vector<16x8xf32> to vector<16xf32>
    %49 = vector.shape_cast %48 : vector<16xf32> to vector<16x1xf32>
    %50 = vector.broadcast %49 : vector<16x1xf32> to vector<16x8xf32>
    %51 = arith.cmpf oeq, %47, %50 : vector<16x8xf32>
    %c8_i32_19 = arith.constant 8 : i32
    %52 = vector.broadcast %c8_i32_19 : i32 to vector<16x8xi32>
    %53 = arith.select %51, %35, %52 : vector<16x8xi1>, vector<16x8xi32>
    %cst_20 = arith.constant dense<2147483647> : vector<16xi32>
    %54 = vector.multi_reduction <minsi>, %53, %cst_20 [1] : vector<16x8xi32> to vector<16xi32>
    %55 = vector.shape_cast %54 : vector<16xi32> to vector<16x1xi32>
    %56 = arith.addf %37, %49 : vector<16x1xf32>
    %57 = tpu.reciprocal %56 {approx = true} : vector<16x1xf32> -> vector<16x1xf32>
    %58 = arith.mulf %56, %57 : vector<16x1xf32>
    %cst_21 = arith.constant 2.000000e+00 : f32
    %59 = vector.broadcast %cst_21 : f32 to vector<16x1xf32>
    %60 = arith.subf %59, %58 : vector<16x1xf32>
    %61 = arith.mulf %57, %60 : vector<16x1xf32>
    %62 = vector.broadcast %43 : vector<16x1xi32> to vector<16x8xi32>
    %63 = arith.cmpi eq, %35, %62 : vector<16x8xi32>
    %64 = arith.mulf %37, %61 : vector<16x1xf32>
    %65 = vector.broadcast %55 : vector<16x1xi32> to vector<16x8xi32>
    %66 = arith.cmpi eq, %35, %65 : vector<16x8xi32>
    %67 = arith.mulf %49, %61 : vector<16x1xf32>
    %cst_22 = arith.constant 0.000000e+00 : f32
    %68 = vector.shape_cast %67 : vector<16x1xf32> to vector<16x1xf32>
    %69 = vector.broadcast %68 : vector<16x1xf32> to vector<16x8xf32>
    %70 = vector.broadcast %cst_22 : f32 to vector<16x8xf32>
    %71 = arith.select %66, %69, %70 : vector<16x8xi1>, vector<16x8xf32>
    %72 = vector.shape_cast %64 : vector<16x1xf32> to vector<16x1xf32>
    %73 = vector.broadcast %72 : vector<16x1xf32> to vector<16x8xf32>
    %74 = arith.select %63, %73, %71 : vector<16x8xi1>, vector<16x8xf32>
    %75 = arith.truncf %0 : vector<16x32xf32> to vector<16x32xbf16>
    %c0_23 = arith.constant 0 : index
    %c0_24 = arith.constant 0 : index
    %76 = vector.load %arg3[%c0_23, %c0_24] : memref<32x1024xbf16, #tpu.memory_space<vmem>>, vector<32x1024xbf16>
    %cst_25 = arith.constant dense<0.000000e+00> : vector<16x1024xf32>
    %77 = tpu.matmul %75, %76, %cst_25 {dimension_numbers = #tpu.dot_dimension_numbers<[1], [0], [0], [1], [0, 0, 1, 1], [], []>} : vector<16x32xbf16>, vector<32x1024xbf16>, vector<16x1024xf32> -> vector<16x1024xf32>
    %c0_26 = arith.constant 0 : index
    %c0_27 = arith.constant 0 : index
    %78 = vector.load %arg4[%c0_26, %c0_27] : memref<1x1024xf32, #tpu.memory_space<vmem>>, vector<1x1024xf32>
    %79 = vector.broadcast %78 : vector<1x1024xf32> to vector<16x1024xf32>
    %80 = arith.addf %77, %79 : vector<16x1024xf32>
    %81 = math.absf %80 : vector<16x1024xf32>
    %cst_28 = arith.constant 0.707106769 : f32
    %82 = vector.broadcast %cst_28 : f32 to vector<16x1024xf32>
    %83 = arith.mulf %81, %82 : vector<16x1024xf32>
    %cst_29 = arith.constant 0.327591091 : f32
    %84 = vector.broadcast %cst_29 : f32 to vector<16x1024xf32>
    %85 = arith.mulf %84, %83 : vector<16x1024xf32>
    %cst_30 = arith.constant 1.000000e+00 : f32
    %86 = vector.broadcast %cst_30 : f32 to vector<16x1024xf32>
    %87 = arith.addf %86, %85 : vector<16x1024xf32>
    %88 = tpu.reciprocal %87 {approx = true} : vector<16x1024xf32> -> vector<16x1024xf32>
    %89 = arith.mulf %87, %88 : vector<16x1024xf32>
    %cst_31 = arith.constant 2.000000e+00 : f32
    %90 = vector.broadcast %cst_31 : f32 to vector<16x1024xf32>
    %91 = arith.subf %90, %89 : vector<16x1024xf32>
    %92 = arith.mulf %88, %91 : vector<16x1024xf32>
    %cst_32 = arith.constant 1.06140542 : f32
    %93 = vector.broadcast %cst_32 : f32 to vector<16x1024xf32>
    %94 = arith.mulf %93, %92 : vector<16x1024xf32>
    %cst_33 = arith.constant -1.45315206 : f32
    %95 = vector.broadcast %cst_33 : f32 to vector<16x1024xf32>
    %96 = arith.addf %94, %95 : vector<16x1024xf32>
    %97 = arith.mulf %96, %92 : vector<16x1024xf32>
    %cst_34 = arith.constant 1.42141378 : f32
    %98 = vector.broadcast %cst_34 : f32 to vector<16x1024xf32>
    %99 = arith.addf %97, %98 : vector<16x1024xf32>
    %100 = arith.mulf %99, %92 : vector<16x1024xf32>
    %cst_35 = arith.constant -0.284496725 : f32
    %101 = vector.broadcast %cst_35 : f32 to vector<16x1024xf32>
    %102 = arith.addf %100, %101 : vector<16x1024xf32>
    %103 = arith.mulf %102, %92 : vector<16x1024xf32>
    %cst_36 = arith.constant 0.254829586 : f32
    %104 = vector.broadcast %cst_36 : f32 to vector<16x1024xf32>
    %105 = arith.addf %103, %104 : vector<16x1024xf32>
    %106 = arith.mulf %105, %92 : vector<16x1024xf32>
    %cst_37 = arith.constant 0.000000e+00 : f32
    %107 = vector.broadcast %cst_37 : f32 to vector<16x1024xf32>
    %108 = arith.subf %107, %83 : vector<16x1024xf32>
    %109 = arith.mulf %108, %83 : vector<16x1024xf32>
    %110 = math.exp %109 : vector<16x1024xf32>
    %111 = arith.mulf %106, %110 : vector<16x1024xf32>
    %cst_38 = arith.constant 1.000000e+00 : f32
    %112 = vector.broadcast %cst_38 : f32 to vector<16x1024xf32>
    %113 = arith.subf %112, %111 : vector<16x1024xf32>
    %cst_39 = arith.constant 0.000000e+00 : f32
    %114 = vector.broadcast %cst_39 : f32 to vector<16x1024xf32>
    %115 = arith.cmpf oge, %80, %114 : vector<16x1024xf32>
    %cst_40 = arith.constant 0.000000e+00 : f32
    %116 = vector.broadcast %cst_40 : f32 to vector<16x1024xf32>
    %117 = arith.subf %116, %113 : vector<16x1024xf32>
    %118 = arith.select %115, %113, %117 : vector<16x1024xi1>, vector<16x1024xf32>
    %cst_41 = arith.constant 5.000000e-01 : f32
    %119 = vector.broadcast %cst_41 : f32 to vector<16x1024xf32>
    %120 = arith.mulf %119, %80 : vector<16x1024xf32>
    %cst_42 = arith.constant 1.000000e+00 : f32
    %121 = vector.broadcast %cst_42 : f32 to vector<16x1024xf32>
    %122 = arith.addf %121, %118 : vector<16x1024xf32>
    %123 = arith.mulf %120, %122 : vector<16x1024xf32>
    %124 = arith.truncf %74 : vector<16x8xf32> to vector<16x8xbf16>
    %c0_43 = arith.constant 0 : index
    %c0_44 = arith.constant 0 : index
    %125 = vector.load %arg6[%c0_43, %c0_44] : memref<8x1056xbf16, #tpu.memory_space<vmem>>, vector<8x1056xbf16>
    %cst_45 = arith.constant dense<0.000000e+00> : vector<16x1056xf32>
    %126 = tpu.matmul %124, %125, %cst_45 {dimension_numbers = #tpu.dot_dimension_numbers<[1], [0], [0], [1], [0, 0, 1, 1], [], []>} : vector<16x8xbf16>, vector<8x1056xbf16>, vector<16x1056xf32> -> vector<16x1056xf32>
    %127 = vector.extract_strided_slice %126 {offsets = [0, 0], sizes = [16, 1024], strides = [1, 1]} : vector<16x1056xf32> to vector<16x1024xf32>
    %128 = vector.extract_strided_slice %126 {offsets = [0, 1024], sizes = [16, 32], strides = [1, 1]} : vector<16x1056xf32> to vector<16x32xf32>
    %129 = arith.mulf %123, %127 : vector<16x1024xf32>
    %130 = arith.truncf %129 : vector<16x1024xf32> to vector<16x1024xbf16>
    %c0_46 = arith.constant 0 : index
    %c0_47 = arith.constant 0 : index
    %131 = vector.load %arg5[%c0_46, %c0_47] : memref<1024x32xbf16, #tpu.memory_space<vmem>>, vector<1024x32xbf16>
    %cst_48 = arith.constant dense<0.000000e+00> : vector<16x32xf32>
    %132 = tpu.matmul %130, %131, %cst_48 {dimension_numbers = #tpu.dot_dimension_numbers<[1], [0], [0], [1], [0, 0, 1, 1], [], []>} : vector<16x1024xbf16>, vector<1024x32xbf16>, vector<16x32xf32> -> vector<16x32xf32>
    %133 = arith.addf %132, %128 : vector<16x32xf32>
    %c0_49 = arith.constant 0 : index
    %c0_50 = arith.constant 0 : index
    %134 = vector.load %arg7[%c0_49, %c0_50] : memref<16x32xf32, #tpu.memory_space<vmem>>, vector<16x32xf32>
    tpu.vector_store %arg7[%c0_49, %c0_50], %133 {strides = array<i32>} : memref<16x32xf32, #tpu.memory_space<vmem>>, vector<16x32xf32>,
    return
  }
  func.func @transform_0(%arg0: i32) -> (i32, i32) {
    %c0_i32 = arith.constant 0 : i32
    %c0_i32_0 = arith.constant 0 : i32
    return %arg0, %c0_i32 : i32, i32
  }
  func.func @transform_1(%arg0: i32) -> (i32, i32) {
    %c0_i32 = arith.constant 0 : i32
    %c0_i32_0 = arith.constant 0 : i32
    %c0_i32_1 = arith.constant 0 : i32
    return %c0_i32, %c0_i32_0 : i32, i32
  }
  func.func @transform_2(%arg0: i32) -> (i32, i32) {
    %c0_i32 = arith.constant 0 : i32
    %c0_i32_0 = arith.constant 0 : i32
    %c0_i32_1 = arith.constant 0 : i32
    return %c0_i32, %c0_i32_0 : i32, i32
  }
  func.func @transform_3(%arg0: i32) -> (i32, i32) {
    %c0_i32 = arith.constant 0 : i32
    %c0_i32_0 = arith.constant 0 : i32
    %c0_i32_1 = arith.constant 0 : i32
    return %c0_i32, %c0_i32_0 : i32, i32
  }
  func.func @transform_4(%arg0: i32) -> (i32, i32) {
    %c0_i32 = arith.constant 0 : i32
    %c0_i32_0 = arith.constant 0 : i32
    %c0_i32_1 = arith.constant 0 : i32
    return %c0_i32, %c0_i32_0 : i32, i32
  }
  func.func @transform_5(%arg0: i32) -> (i32, i32) {
    %c0_i32 = arith.constant 0 : i32
    %c0_i32_0 = arith.constant 0 : i32
    %c0_i32_1 = arith.constant 0 : i32
    return %c0_i32, %c0_i32_0 : i32, i32
  }
  func.func @transform_6(%arg0: i32) -> (i32, i32) {
    %c0_i32 = arith.constant 0 : i32
    %c0_i32_0 = arith.constant 0 : i32
    return %arg0, %c0_i32 : i32, i32
  }
  func.func @transform_7(%arg0: i32) -> i32 {
    %c0_i32 = arith.constant 0 : i32
    %c0_i32_0 = arith.constant 0 : i32
    return %c0_i32 : i32
  }
}

</mosaic_0001>

<llo_original>
// kernel: tpu_custom_call.1
$region0: #{tpu_custom_call.1}
  #allocation0 [shape = 'u32[]', space=smem, size = 0x4, offset = 0x4, fixed_abs, tag = 'smem constant byte address 0x4 - core index']
  #allocation1 [shape = 'u32[144,128]{1,0:T(1,128)}', space=vmem, size = 0x12000, scoped, tag = 'internal scratch']
  %s0 = inlined_call_operand.vmem [shape: f32[16,32], index: 0, kind: input, shape index: {}]
  %s1 = inlined_call_operand.vmem [shape: f32[32,8], index: 1, kind: input, shape index: {}]
  %s2 = inlined_call_operand.vmem [shape: bf16[32,1024], index: 2, kind: input, shape index: {}]
  %s3 = inlined_call_operand.vmem [shape: f32[1,1024], index: 3, kind: input, shape index: {}]
  %s4 = inlined_call_operand.vmem [shape: bf16[1024,32], index: 4, kind: input, shape index: {}]
  %s5 = inlined_call_operand.vmem [shape: bf16[8,1056], index: 5, kind: input, shape index: {}]
  %s6 = inlined_call_operand.hbm [shape: f32[16,32], index: 6, kind: output, shape index: {0}]
  %s7 = inlined_call_operand.hbm [shape: f32[1], index: 7, kind: output, shape index: {1}]
  %8 = xla_tuple %s6, %s7
  %s9 = sld [smem:[#allocation0]]
  $region42: #{tpu_custom_call.1} parent=0
    _
  %s11 = ssub.s32 1, %s9
  %s12 = scalar_select 0, %s11, %s9
  $region1: #{tpu_custom_call.1} parent=0
    #allocation2 [shape = 'u8[8192]{0}', space=vmem, size = 0x2000, scoped, tag = 'output window, operand 0, single buffered']
    #allocation3 [shape = 's32[1]{0}', space=sflag, size = 0x4, scoped, tag = 'scoped memory for tpu_custom_call.1']
    #allocation4 [shape = 's32[1]{0}', space=sflag, size = 0x4, scoped, tag = 'scoped memory for tpu_custom_call.1']
    #allocation5 [shape = 'u8[512]{0}', space=smem, size = 0x200, scoped, tag = 'output window, operand 1, single buffered']
    %13 = vsyncpa [#allocation3], 0
    %14 = vsyncpa [#allocation4], 0
    // Predicated region
    $region2: #{tpu_custom_call.1} parent=1 // pred_check
      _
    $region3: #{tpu_custom_call.1} parent=1 // pred_check_branch
      %16 = sbr.rel (0) target = $region5
    $region4: #{tpu_custom_call.1} parent=1 // pred_region
      _
    $region5: #{tpu_custom_call.1} parent=1 // pred_fallthru
      _
    // Predicated region
    $region6: #{tpu_custom_call.1} parent=1 // pred_check
      _
    $region7: #{tpu_custom_call.1} parent=1 // pred_check_branch
      %18 = sbr.rel (0) target = $region9
    $region8: #{tpu_custom_call.1} parent=1 // pred_region
      _
    $region9: #{tpu_custom_call.1} parent=1 // pred_fallthru
      _
    // Predicated region
    $region10: #{tpu_custom_call.1} parent=1 // pred_check
      _
    $region11: #{tpu_custom_call.1} parent=1 // pred_check_branch
      %20 = sbr.rel (0) target = $region13
    $region12: #{tpu_custom_call.1} parent=1 // pred_region
      _
    $region13: #{tpu_custom_call.1} parent=1 // pred_fallthru
      _
    // Predicated region
    $region14: #{tpu_custom_call.1} parent=1 // pred_check
      _
    $region15: #{tpu_custom_call.1} parent=1 // pred_check_branch
      %22 = sbr.rel (0) target = $region17
    $region16: #{tpu_custom_call.1} parent=1 // pred_region
      _
    $region17: #{tpu_custom_call.1} parent=1 // pred_fallthru
      _
    // Predicated region
    $region18: #{tpu_custom_call.1} parent=1 // pred_check
      _
    $region19: #{tpu_custom_call.1} parent=1 // pred_check_branch
      %24 = sbr.rel (0) target = $region21
    $region20: #{tpu_custom_call.1} parent=1 // pred_region
      _
    $region21: #{tpu_custom_call.1} parent=1 // pred_fallthru
      _
    // Predicated region
    $region22: #{tpu_custom_call.1} parent=1 // pred_check
      _
    $region23: #{tpu_custom_call.1} parent=1 // pred_check_branch
      %26 = sbr.rel (0) target = $region25
    $region24: #{tpu_custom_call.1} parent=1 // pred_region
      _
    $region25: #{tpu_custom_call.1} parent=1 // pred_fallthru
      _
    %v28 = vld [vmem:[%s0] sm:$0xff]
    %v29 = vld [vmem:[%s0 + $0x8] sm:$0xff]
    %v30 = vld [vmem:[%s1] sm:$0xff]
    %v31 = vld [vmem:[%s1 + $0x8] sm:$0xff]
    %v32 = vld [vmem:[%s1 + $0x10] sm:$0xff]
    %v33 = vld [vmem:[%s1 + $0x18] sm:$0xff]
    %vm34 = vcmask 261120
    %v36 = vsel %vm34, %v28, 0
    %v39 = vsel %vm34, %v29, 0
    %41 = vmatprep.subr.mxu0 0.0
    %42 = vmatpush1.msra.mxu0 %v30
    %43 = vmatprep.subr.mxu0 0.0
    %44 = vmatpush1.msra.mxu0 %v31
    %45 = vmatprep.subr.mxu0 0.0
    %46 = vmatpush1.msra.mxu0 %v32
    %47 = vmatprep.subr.mxu0 0.0
    %48 = vmatpush1.msra.mxu0 %v33
    %49 = vmatprep.subr.mxu0 0.0
    %50 = vmatpush1.msra.mxu0 0.0
    %51 = vmatprep.subr.mxu0 0.0
    %52 = vmatpush1.msra.mxu0 0.0
    %53 = vmatprep.subr.mxu0 0.0
    %54 = vmatpush1.msra.mxu0 0.0
    %55 = vmatprep.subr.mxu0 0.0
    %56 = vmatpush1.msra.mxu0 0.0
    %57 = vmatprep.subr.mxu0 0.0
    %58 = vmatpush1.msra.mxu0 0.0
    %59 = vmatprep.subr.mxu0 0.0
    %60 = vmatpush1.msra.mxu0 0.0
    %61 = vmatprep.subr.mxu0 0.0
    %62 = vmatpush1.msra.mxu0 0.0
    %63 = vmatprep.subr.mxu0 0.0
    %64 = vmatpush1.msra.mxu0 0.0
    %65 = vmatprep.subr.mxu0 0.0
    %66 = vmatpush1.msra.mxu0 0.0
    %67 = vmatprep.subr.mxu0 0.0
    %68 = vmatpush1.msra.mxu0 0.0
    %69 = vmatprep.subr.mxu0 0.0
    %70 = vmatpush1.msra.mxu0 0.0
    %71 = vmatprep.subr.mxu0 0.0
    %72 = vmatpush1.msra.mxu0 0.0
    %73 = vmatprep.subr.mxu0 0.0
    %74 = vmatpush1.msra.mxu0 0.0
    %75 = vmatprep.subr.mxu0 0.0
    %76 = vmatpush1.msra.mxu0 0.0
    %77 = vmatprep.subr.mxu0 0.0
    %78 = vmatpush1.msra.mxu0 0.0
    %79 = vmatprep.subr.mxu0 0.0
    %80 = vmatpush1.msra.mxu0 0.0
    %81 = vmatprep.subr.mxu0 0.0
    %82 = vmatpush1.msra.mxu0 0.0
    %83 = vmatprep.subr.mxu0 0.0
    %84 = vmatpush1.msra.mxu0 0.0
    %85 = vmatprep.subr.mxu0 0.0
    %86 = vmatpush1.msra.mxu0 0.0
    %87 = vmatprep.subr.mxu0 0.0
    %88 = vmatpush1.msra.mxu0 0.0
    %89 = vmatprep.subr.mxu0 0.0
    %90 = vmatpush1.msra.mxu0 0.0
    %91 = vmatprep.subr.mxu0 0.0
    %92 = vmatpush1.msra.mxu0 0.0
    %93 = vmatprep.subr.mxu0 0.0
    %94 = vmatpush1.msra.mxu0 0.0
    %95 = vmatprep.subr.mxu0 0.0
    %96 = vmatpush1.msra.mxu0 0.0
    %97 = vmatprep.subr.mxu0 0.0
    %98 = vmatpush1.msra.mxu0 0.0
    %99 = vmatprep.subr.mxu0 0.0
    %100 = vmatpush1.msra.mxu0 0.0
    %101 = vmatprep.subr.mxu0 0.0
    %102 = vmatpush1.msra.mxu0 0.0
    %103 = vmatprep.subr.mxu0 0.0
    %104 = vmatpush1.msra.mxu0 0.0
    %105 = vmatprep.mubr.f32.mxu0 0.0
    %106 = vmatmul.mubr.f32.gmra.mrb[0].mxu0 %v36
    %v107 = vpop.f32.mrb[0].mxu0
    %v108 = vadd.f32 0.0, %v107
    %v109 = vpop.f32.mrb[0].mxu0
    %110 = vmatprep.mubr.f32.mxu0 0.0
    %111 = vmatmul.mubr.f32.gmra.mrb[0].mxu0 %v39
    %v112 = vpop.f32.mrb[0].mxu0
    %v113 = vadd.f32 0.0, %v112
    %v114 = vpop.f32.mrb[0].mxu0
    %115 = vdwg.mxu0
    %vm116 = vcmask 64512
    %v117 = vsel %vm116, %v108, -inf
    %118 = vmax.xlane.f32.xlu0 %v117
    %v119 = vpop.xlane.xlu0 %118
    %v120 = vsel %vm116, %v113, -inf
    %121 = vmax.xlane.f32.xlu0 %v120
    %v122 = vpop.xlane.xlu0 %121
    %v123 = vsub.f32 %v108, %v119
    %v124 = vsub.f32 %v113, %v122
    %v125 = vmul.f32 %v123, 1.442695
    %v126 = vpow.pop %v125
    %v127 = vmul.f32 %v124, 1.442695
    %v128 = vpow.pop %v127
    %v129 = vsel %vm116, %v126, 0.0
    %130 = vadd.xlane.f32.xlu0 %v129
    %v131 = vpop.xlane.xlu0 %130
    %v132 = vsel %vm116, %v128, 0.0
    %133 = vadd.xlane.f32.xlu0 %v132
    %v134 = vpop.xlane.xlu0 %133
    %v135 = vrcp.pop %v131
    %v136 = vrcp.pop %v134
    %v137 = vmul.f32 %v131, %v135
    %v138 = vmul.f32 %v134, %v136
    %v139 = vsub.f32 2.0, %v137
    %v140 = vsub.f32 2.0, %v138
    %v141 = vmul.f32 %v135, %v139
    %v142 = vmul.f32 %v136, %v140
    %v143 = vmul.f32 %v126, %v141
    %v144 = vmul.f32 %v128, %v142
    %v145 = vsel %vm116, %v143, 0.0
    %v146 = vsel %vm116, %v144, 0.0
    %v147 = vadd.f32 %v145, %v146
    %v148 = vrot.slane %v147, 4
    %v149 = vadd.f32 %v147, %v148
    %v150 = vrot.slane %v149, 2
    %v151 = vadd.f32 %v149, %v150
    %v152 = vrot.slane %v151, 1
    %v153 = vadd.f32 %v151, %v152
    %vm154 = vcmp.gt.f32.partialorder %v143, 0.0
    %vm155 = vcmp.gt.f32.partialorder %v144, 0.0
    %v156 = vsel %vm154, 1.0, 0.0
    %v157 = vsel %vm155, 1.0, 0.0
    %v158 = vsel %vm116, %v156, 0.0
    %v159 = vsel %vm116, %v157, 0.0
    %v160 = vadd.f32 %v158, %v159
    %v161 = vrot.slane %v160, 4
    %v162 = vadd.f32 %v160, %v161
    %v163 = vrot.slane %v162, 2
    %v164 = vadd.f32 %v162, %v163
    %v165 = vrot.slane %v164, 1
    %v166 = vadd.f32 %v164, %v165
    %v167 = vmul.f32 %v153, %v166
    %vm168 = vcmask 57344
    %v169 = vsel %vm168, %v167, 0.0
    %170 = vadd.xlane.f32.xlu0 %v169
    %v171 = vpop.xlane.xlu0 %170
    %v172 = vrot.slane %v171, 4
    %v173 = vadd.f32 %v171, %v172
    %v174 = vrot.slane %v173, 2
    %v175 = vadd.f32 %v173, %v174
    %v176 = vrot.slane %v175, 1
    %v177 = vadd.f32 %v175, %v176
    %s178 = vtos %v177
    %s179 = smul.f32 %s178, 0.03125
    %s180 = scalar_lea.smem [#allocation5], 0
    %181 = sst [smem:[%s180]] %s179
    %v182 = vlaneseq
    %v183 = vand.u32 %v182, 127
    %v184 = vsel %vm116, %v143, -inf
    %185 = vmax.xlane.f32.xlu0 %v184
    %v186 = vpop.xlane.xlu0 %185
    %v187 = vsel %vm116, %v144, -inf
    %188 = vmax.xlane.f32.xlu0 %v187
    %v189 = vpop.xlane.xlu0 %188
    %vm190 = vcmp.eq.f32.partialorder %v143, %v186
    %vm191 = vcmp.eq.f32.partialorder %v144, %v189
    %v192 = vsel %vm190, %v183, 8
    %v193 = vsel %vm191, %v183, 8
    %v194 = vsel %vm116, %v192, 2147483647
    %v195 = vand.u32 %v194, 65535
    %v196 = vshra.s32 %v194, 16
    %v197 = vcvt.s32.f32 %v195
    %v198 = vcvt.s32.f32 %v196
    %199 = vmin.xlane.f32.xlu0 %v198
    %v200 = vpop.xlane.xlu0 %199
    %vm201 = vcmp.eq.f32.partialorder %v198, %v200
    %v202 = vsel %vm201, %v197, inf
    %203 = vmin.xlane.f32.xlu0 %v202
    %v204 = vpop.xlane.xlu0 %203
    %v205 = vcvt.f32.s32 %v204
    %v206 = vcvt.f32.s32 %v200
    %v207 = vshll.u32 %v206, 16
    %v208 = vadd.s32 %v207, %v205
    %v209 = vsel %vm116, %v193, 2147483647
    %v210 = vand.u32 %v209, 65535
    %v211 = vshra.s32 %v209, 16
    %v212 = vcvt.s32.f32 %v210
    %v213 = vcvt.s32.f32 %v211
    %214 = vmin.xlane.f32.xlu0 %v213
    %v215 = vpop.xlane.xlu0 %214
    %vm216 = vcmp.eq.f32.partialorder %v213, %v215
    %v217 = vsel %vm216, %v212, inf
    %218 = vmin.xlane.f32.xlu0 %v217
    %v219 = vpop.xlane.xlu0 %218
    %v220 = vcvt.f32.s32 %v219
    %v221 = vcvt.f32.s32 %v215
    %v222 = vshll.u32 %v221, 16
    %v223 = vadd.s32 %v222, %v220
    %vm224 = vcmp.eq.s32.totalorder %v183, %v208
    %vm225 = vcmp.eq.s32.totalorder %v183, %v223
    %v226 = vsel %vm224, -inf, %v143
    %v227 = vsel %vm225, -inf, %v144
    %v228 = vsel %vm116, %v226, -inf
    %229 = vmax.xlane.f32.xlu0 %v228
    %v230 = vpop.xlane.xlu0 %229
    %v231 = vsel %vm116, %v227, -inf
    %232 = vmax.xlane.f32.xlu0 %v231
    %v233 = vpop.xlane.xlu0 %232
    %vm234 = vcmp.eq.f32.partialorder %v226, %v230
    %vm235 = vcmp.eq.f32.partialorder %v227, %v233
    %v236 = vsel %vm234, %v183, 8
    %v237 = vsel %vm235, %v183, 8
    %v238 = vsel %vm116, %v236, 2147483647
    %v239 = vand.u32 %v238, 65535
    %v240 = vshra.s32 %v238, 16
    %v241 = vcvt.s32.f32 %v239
    %v242 = vcvt.s32.f32 %v240
    %243 = vmin.xlane.f32.xlu0 %v242
    %v244 = vpop.xlane.xlu0 %243
    %vm245 = vcmp.eq.f32.partialorder %v242, %v244
    %v246 = vsel %vm245, %v241, inf
    %247 = vmin.xlane.f32.xlu0 %v246
    %v248 = vpop.xlane.xlu0 %247
    %v249 = vcvt.f32.s32 %v248
    %v250 = vcvt.f32.s32 %v244
    %v251 = vshll.u32 %v250, 16
    %v252 = vadd.s32 %v251, %v249
    %v253 = vsel %vm116, %v237, 2147483647
    %v254 = vand.u32 %v253, 65535
    %v255 = vshra.s32 %v253, 16
    %v256 = vcvt.s32.f32 %v254
    %v257 = vcvt.s32.f32 %v255
    %258 = vmin.xlane.f32.xlu0 %v257
    %v259 = vpop.xlane.xlu0 %258
    %vm260 = vcmp.eq.f32.partialorder %v257, %v259
    %v261 = vsel %vm260, %v256, inf
    %262 = vmin.xlane.f32.xlu0 %v261
    %v263 = vpop.xlane.xlu0 %262
    %v264 = vcvt.f32.s32 %v263
    %v265 = vcvt.f32.s32 %v259
    %v266 = vshll.u32 %v265, 16
    %v267 = vadd.s32 %v266, %v264
    %v268 = vadd.f32 %v186, %v230
    %v269 = vadd.f32 %v189, %v233
    %v270 = vrcp.pop %v268
    %v271 = vrcp.pop %v269
    %v272 = vmul.f32 %v268, %v270
    %v273 = vmul.f32 %v269, %v271
    %v274 = vsub.f32 2.0, %v272
    %v275 = vsub.f32 2.0, %v273
    %v276 = vmul.f32 %v270, %v274
    %v277 = vmul.f32 %v271, %v275
    %v278 = vmul.f32 %v186, %v276
    %v279 = vmul.f32 %v189, %v277
    %vm280 = vcmp.eq.s32.totalorder %v183, %v252
    %vm281 = vcmp.eq.s32.totalorder %v183, %v267
    %v282 = vmul.f32 %v230, %v276
    %v283 = vmul.f32 %v233, %v277
    %v284 = vsel %vm280, %v282, 0.0
    %v285 = vsel %vm281, %v283, 0.0
    %v286 = vsel %vm224, %v278, %v284
    %v287 = vsel %vm225, %v279, %v285
    %v288 = vpack.c.bf16 %v29, %v28
    %v289 = vld [vmem:[%s2] sm:$0xff]
    %v290 = vld [vmem:[%s2 + $0x8] sm:$0xff]
    %v291 = vld [vmem:[%s2 + $0x10] sm:$0xff]
    %v292 = vld [vmem:[%s2 + $0x18] sm:$0xff]
    %v293 = vld [vmem:[%s2 + $0x20] sm:$0xff]
    %v294 = vld [vmem:[%s2 + $0x28] sm:$0xff]
    %v295 = vld [vmem:[%s2 + $0x30] sm:$0xff]
    %v296 = vld [vmem:[%s2 + $0x38] sm:$0xff]
    %v297 = vld [vmem:[%s2 + $0x40] sm:$0xff]
    %v298 = vld [vmem:[%s2 + $0x48] sm:$0xff]
    %v299 = vld [vmem:[%s2 + $0x50] sm:$0xff]
    %v300 = vld [vmem:[%s2 + $0x58] sm:$0xff]
    %v301 = vld [vmem:[%s2 + $0x60] sm:$0xff]
    %v302 = vld [vmem:[%s2 + $0x68] sm:$0xff]
    %v303 = vld [vmem:[%s2 + $0x70] sm:$0xff]
    %v304 = vld [vmem:[%s2 + $0x78] sm:$0xff]
    %v305 = vld [vmem:[%s3] sm:$0xff]
    %v307 = vlaneseq
    %v308 = vshrl.u32 %v307, 7
    %v309 = vsub.s32 0, %v308
    %v310 = vrot.slane %v305, %v309
    %v311 = vlaneseq
    %v312 = vshrl.u32 %v311, 7
    %v313 = vsub.s32 1, %v312
    %v314 = vrot.slane %v305, %v313
    %v315 = vlaneseq
    %v316 = vshrl.u32 %v315, 7
    %v317 = vsub.s32 2, %v316
    %v318 = vrot.slane %v305, %v317
    %v319 = vlaneseq
    %v320 = vshrl.u32 %v319, 7
    %v321 = vsub.s32 3, %v320
    %v322 = vrot.slane %v305, %v321
    %v323 = vlaneseq
    %v324 = vshrl.u32 %v323, 7
    %v325 = vsub.s32 4, %v324
    %v326 = vrot.slane %v305, %v325
    %v327 = vlaneseq
    %v328 = vshrl.u32 %v327, 7
    %v329 = vsub.s32 5, %v328
    %v330 = vrot.slane %v305, %v329
    %v331 = vlaneseq
    %v332 = vshrl.u32 %v331, 7
    %v333 = vsub.s32 6, %v332
    %v334 = vrot.slane %v305, %v333
    %v335 = vlaneseq
    %v336 = vshrl.u32 %v335, 7
    %v337 = vsub.s32 7, %v336
    %v338 = vrot.slane %v305, %v337
    %v363 = vunpack.c.l.b16 %v289
    %v364 = vunpack.c.h.b16 %v289
    %v365 = vunpack.c.l.b16 %v290
    %v366 = vunpack.c.h.b16 %v290
    %v367 = vunpack.c.l.b16 %v291
    %v368 = vunpack.c.h.b16 %v291
    %v369 = vunpack.c.l.b16 %v292
    %v370 = vunpack.c.h.b16 %v292
    %v371 = vunpack.c.l.b16 %v293
    %v372 = vunpack.c.h.b16 %v293
    %v373 = vunpack.c.l.b16 %v294
    %v374 = vunpack.c.h.b16 %v294
    %v375 = vunpack.c.l.b16 %v295
    %v376 = vunpack.c.h.b16 %v295
    %v377 = vunpack.c.l.b16 %v296
    %v378 = vunpack.c.h.b16 %v296
    %v379 = vunpack.c.l.b16 %v297
    %v380 = vunpack.c.h.b16 %v297
    %v381 = vunpack.c.l.b16 %v298
    %v382 = vunpack.c.h.b16 %v298
    %v383 = vunpack.c.l.b16 %v299
    %v384 = vunpack.c.h.b16 %v299
    %v385 = vunpack.c.l.b16 %v300
    %v386 = vunpack.c.h.b16 %v300
    %v387 = vunpack.c.l.b16 %v301
    %v388 = vunpack.c.h.b16 %v301
    %v389 = vunpack.c.l.b16 %v302
    %v390 = vunpack.c.h.b16 %v302
    %v391 = vunpack.c.l.b16 %v303
    %v392 = vunpack.c.h.b16 %v303
    %v393 = vunpack.c.l.b16 %v304
    %v394 = vunpack.c.h.b16 %v304
    %v395 = vpack.c.b16 %v371, %v363
    %v396 = vpack.c.b16 %v372, %v364
    %v397 = vpack.c.b16 %v373, %v365
    %v398 = vpack.c.b16 %v374, %v366
    %v399 = vpack.c.b16 %v375, %v367
    %v400 = vpack.c.b16 %v376, %v368
    %v401 = vpack.c.b16 %v377, %v369
    %v402 = vpack.c.b16 %v378, %v370
    %v403 = vpack.c.b16 %v387, %v379
    %v404 = vpack.c.b16 %v388, %v380
    %v405 = vpack.c.b16 %v389, %v381
    %v406 = vpack.c.b16 %v390, %v382
    %v407 = vpack.c.b16 %v391, %v383
    %v408 = vpack.c.b16 %v392, %v384
    %v409 = vpack.c.b16 %v393, %v385
    %v410 = vpack.c.b16 %v394, %v386
    %v428 = vsel %vm34, %v288, 0
    %430 = vmatprep.subr.bf16.mxu0 %v396
    %431 = vmatpush1.bf16.msra.mxu0 %v395
    %432 = vmatprep.subr.bf16.mxu0 %v404
    %433 = vmatpush1.bf16.msra.mxu0 %v403
    %434 = vmatprep.subr.bf16.mxu0 0
    %435 = vmatpush1.bf16.msra.mxu0 0
    %436 = vmatprep.subr.bf16.mxu0 0
    %437 = vmatpush1.bf16.msra.mxu0 0
    %438 = vmatprep.subr.bf16.mxu0 0
    %439 = vmatpush1.bf16.msra.mxu0 0
    %440 = vmatprep.subr.bf16.mxu0 0
    %441 = vmatpush1.bf16.msra.mxu0 0
    %442 = vmatprep.subr.bf16.mxu0 0
    %443 = vmatpush1.bf16.msra.mxu0 0
    %444 = vmatprep.subr.bf16.mxu0 0
    %445 = vmatpush1.bf16.msra.mxu0 0
    %446 = vmatprep.subr.bf16.mxu0 0
    %447 = vmatpush1.bf16.msra.mxu0 0
    %448 = vmatprep.subr.bf16.mxu0 0
    %449 = vmatpush1.bf16.msra.mxu0 0
    %450 = vmatprep.subr.bf16.mxu0 0
    %451 = vmatpush1.bf16.msra.mxu0 0
    %452 = vmatprep.subr.bf16.mxu0 0
    %453 = vmatpush1.bf16.msra.mxu0 0
    %454 = vmatprep.subr.bf16.mxu0 0
    %455 = vmatpush1.bf16.msra.mxu0 0
    %456 = vmatprep.subr.bf16.mxu0 0
    %457 = vmatpush1.bf16.msra.mxu0 0
    %458 = vmatprep.subr.bf16.mxu0 0
    %459 = vmatpush1.bf16.msra.mxu0 0
    %460 = vmatprep.subr.bf16.mxu0 0
    %461 = vmatpush1.bf16.msra.mxu0 0
    %462 = vmatprep.mubr.bf16.mxu0 0
    %463 = vmatmul.mubr.bf16.gmra.mrb[0].mxu0 %v428
    %v464 = vpop.f32.mrb[0].mxu0
    %v465 = vadd.f32 %v310, %v464
    %v466 = vpop.f32.mrb[0].mxu0
    %v467 = vadd.f32 %v314, %v466
    %v468 = vpop.f32.mrb[0].mxu0
    %v469 = vadd.f32 %v310, %v468
    %v470 = vpop.f32.mrb[0].mxu0
    %v471 = vadd.f32 %v314, %v470
    %472 = vdwg.mxu0
    %473 = vmatprep.subr.bf16.mxu0 %v398
    %474 = vmatpush1.bf16.msra.mxu0 %v397
    %475 = vmatprep.subr.bf16.mxu0 %v406
    %476 = vmatpush1.bf16.msra.mxu0 %v405
    %477 = vmatprep.subr.bf16.mxu0 0
    %478 = vmatpush1.bf16.msra.mxu0 0
    %479 = vmatprep.subr.bf16.mxu0 0
    %480 = vmatpush1.bf16.msra.mxu0 0
    %481 = vmatprep.subr.bf16.mxu0 0
    %482 = vmatpush1.bf16.msra.mxu0 0
    %483 = vmatprep.subr.bf16.mxu0 0
    %484 = vmatpush1.bf16.msra.mxu0 0
    %485 = vmatprep.subr.bf16.mxu0 0
    %486 = vmatpush1.bf16.msra.mxu0 0
    %487 = vmatprep.subr.bf16.mxu0 0
    %488 = vmatpush1.bf16.msra.mxu0 0
    %489 = vmatprep.subr.bf16.mxu0 0
    %490 = vmatpush1.bf16.msra.mxu0 0
    %491 = vmatprep.subr.bf16.mxu0 0
    %492 = vmatpush1.bf16.msra.mxu0 0
    %493 = vmatprep.subr.bf16.mxu0 0
    %494 = vmatpush1.bf16.msra.mxu0 0
    %495 = vmatprep.subr.bf16.mxu0 0
    %496 = vmatpush1.bf16.msra.mxu0 0
    %497 = vmatprep.subr.bf16.mxu0 0
    %498 = vmatpush1.bf16.msra.mxu0 0
    %499 = vmatprep.subr.bf16.mxu0 0
    %500 = vmatpush1.bf16.msra.mxu0 0
    %501 = vmatprep.subr.bf16.mxu0 0
    %502 = vmatpush1.bf16.msra.mxu0 0
    %503 = vmatprep.subr.bf16.mxu0 0
    %504 = vmatpush1.bf16.msra.mxu0 0
    %505 = vmatprep.mubr.bf16.mxu0 0
    %506 = vmatmul.mubr.bf16.gmra.mrb[0].mxu0 %v428
    %v507 = vpop.f32.mrb[0].mxu0
    %v508 = vadd.f32 %v318, %v507
    %v509 = vpop.f32.mrb[0].mxu0
    %v510 = vadd.f32 %v322, %v509
    %v511 = vpop.f32.mrb[0].mxu0
    %v512 = vadd.f32 %v318, %v511
    %v513 = vpop.f32.mrb[0].mxu0
    %v514 = vadd.f32 %v322, %v513
    %515 = vdwg.mxu0
    %516 = vmatprep.subr.bf16.mxu0 %v400
    %517 = vmatpush1.bf16.msra.mxu0 %v399
    %518 = vmatprep.subr.bf16.mxu0 %v408
    %519 = vmatpush1.bf16.msra.mxu0 %v407
    %520 = vmatprep.subr.bf16.mxu0 0
    %521 = vmatpush1.bf16.msra.mxu0 0
    %522 = vmatprep.subr.bf16.mxu0 0
    %523 = vmatpush1.bf16.msra.mxu0 0
    %524 = vmatprep.subr.bf16.mxu0 0
    %525 = vmatpush1.bf16.msra.mxu0 0
    %526 = vmatprep.subr.bf16.mxu0 0
    %527 = vmatpush1.bf16.msra.mxu0 0
    %528 = vmatprep.subr.bf16.mxu0 0
    %529 = vmatpush1.bf16.msra.mxu0 0
    %530 = vmatprep.subr.bf16.mxu0 0
    %531 = vmatpush1.bf16.msra.mxu0 0
    %532 = vmatprep.subr.bf16.mxu0 0
    %533 = vmatpush1.bf16.msra.mxu0 0
    %534 = vmatprep.subr.bf16.mxu0 0
    %535 = vmatpush1.bf16.msra.mxu0 0
    %536 = vmatprep.subr.bf16.mxu0 0
    %537 = vmatpush1.bf16.msra.mxu0 0
    %538 = vmatprep.subr.bf16.mxu0 0
    %539 = vmatpush1.bf16.msra.mxu0 0
    %540 = vmatprep.subr.bf16.mxu0 0
    %541 = vmatpush1.bf16.msra.mxu0 0
    %542 = vmatprep.subr.bf16.mxu0 0
    %543 = vmatpush1.bf16.msra.mxu0 0
    %544 = vmatprep.subr.bf16.mxu0 0
    %545 = vmatpush1.bf16.msra.mxu0 0
    %546 = vmatprep.subr.bf16.mxu0 0
    %547 = vmatpush1.bf16.msra.mxu0 0
    %548 = vmatprep.mubr.bf16.mxu0 0
    %549 = vmatmul.mubr.bf16.gmra.mrb[0].mxu0 %v428
    %v550 = vpop.f32.mrb[0].mxu0
    %v551 = vadd.f32 %v326, %v550
    %v552 = vpop.f32.mrb[0].mxu0
    %v553 = vadd.f32 %v330, %v552
    %v554 = vpop.f32.mrb[0].mxu0
    %v555 = vadd.f32 %v326, %v554
    %v556 = vpop.f32.mrb[0].mxu0
    %v557 = vadd.f32 %v330, %v556
    %558 = vdwg.mxu0
    %559 = vmatprep.subr.bf16.mxu0 %v402
    %560 = vmatpush1.bf16.msra.mxu0 %v401
    %561 = vmatprep.subr.bf16.mxu0 %v410
    %562 = vmatpush1.bf16.msra.mxu0 %v409
    %563 = vmatprep.subr.bf16.mxu0 0
    %564 = vmatpush1.bf16.msra.mxu0 0
    %565 = vmatprep.subr.bf16.mxu0 0
    %566 = vmatpush1.bf16.msra.mxu0 0
    %567 = vmatprep.subr.bf16.mxu0 0
    %568 = vmatpush1.bf16.msra.mxu0 0
    %569 = vmatprep.subr.bf16.mxu0 0
    %570 = vmatpush1.bf16.msra.mxu0 0
    %571 = vmatprep.subr.bf16.mxu0 0
    %572 = vmatpush1.bf16.msra.mxu0 0
    %573 = vmatprep.subr.bf16.mxu0 0
    %574 = vmatpush1.bf16.msra.mxu0 0
    %575 = vmatprep.subr.bf16.mxu0 0
    %576 = vmatpush1.bf16.msra.mxu0 0
    %577 = vmatprep.subr.bf16.mxu0 0
    %578 = vmatpush1.bf16.msra.mxu0 0
    %579 = vmatprep.subr.bf16.mxu0 0
    %580 = vmatpush1.bf16.msra.mxu0 0
    %581 = vmatprep.subr.bf16.mxu0 0
    %582 = vmatpush1.bf16.msra.mxu0 0
    %583 = vmatprep.subr.bf16.mxu0 0
    %584 = vmatpush1.bf16.msra.mxu0 0
    %585 = vmatprep.subr.bf16.mxu0 0
    %586 = vmatpush1.bf16.msra.mxu0 0
    %587 = vmatprep.subr.bf16.mxu0 0
    %588 = vmatpush1.bf16.msra.mxu0 0
    %589 = vmatprep.subr.bf16.mxu0 0
    %590 = vmatpush1.bf16.msra.mxu0 0
    %591 = vmatprep.mubr.bf16.mxu0 0
    %592 = vmatmul.mubr.bf16.gmra.mrb[0].mxu0 %v428
    %v593 = vpop.f32.mrb[0].mxu0
    %v594 = vadd.f32 %v334, %v593
    %v595 = vpop.f32.mrb[0].mxu0
    %v596 = vadd.f32 %v338, %v595
    %v597 = vpop.f32.mrb[0].mxu0
    %v598 = vadd.f32 %v334, %v597
    %v599 = vpop.f32.mrb[0].mxu0
    %v600 = vadd.f32 %v338, %v599
    %601 = vdwg.mxu0
    %v602 = vand.u32 2147483647, %v465
    %v603 = vand.u32 2147483647, %v467
    %v604 = vand.u32 2147483647, %v508
    %v605 = vand.u32 2147483647, %v510
    %v606 = vand.u32 2147483647, %v551
    %v607 = vand.u32 2147483647, %v553
    %v608 = vand.u32 2147483647, %v594
    %v609 = vand.u32 2147483647, %v596
    %v610 = vand.u32 2147483647, %v469
    %v611 = vand.u32 2147483647, %v471
    %v612 = vand.u32 2147483647, %v512
    %v613 = vand.u32 2147483647, %v514
    %v614 = vand.u32 2147483647, %v555
    %v615 = vand.u32 2147483647, %v557
    %v616 = vand.u32 2147483647, %v598
    %v617 = vand.u32 2147483647, %v600
    %v618 = vmul.f32 %v602, 0.70710677
    %v619 = vmul.f32 %v603, 0.70710677
    %v620 = vmul.f32 %v604, 0.70710677
    %v621 = vmul.f32 %v605, 0.70710677
    %v622 = vmul.f32 %v606, 0.70710677
    %v623 = vmul.f32 %v607, 0.70710677
    %v624 = vmul.f32 %v608, 0.70710677
    %v625 = vmul.f32 %v609, 0.70710677
    %v626 = vmul.f32 %v610, 0.70710677
    %v627 = vmul.f32 %v611, 0.70710677
    %v628 = vmul.f32 %v612, 0.70710677
    %v629 = vmul.f32 %v613, 0.70710677
    %v630 = vmul.f32 %v614, 0.70710677
    %v631 = vmul.f32 %v615, 0.70710677
    %v632 = vmul.f32 %v616, 0.70710677
    %v633 = vmul.f32 %v617, 0.70710677
    %v634 = vmul.f32 %v618, 0.3275911
    %v635 = vmul.f32 %v619, 0.3275911
    %v636 = vmul.f32 %v620, 0.3275911
    %v637 = vmul.f32 %v621, 0.3275911
    %v638 = vmul.f32 %v622, 0.3275911
    %v639 = vmul.f32 %v623, 0.3275911
    %v640 = vmul.f32 %v624, 0.3275911
    %v641 = vmul.f32 %v625, 0.3275911
    %v642 = vmul.f32 %v626, 0.3275911
    %v643 = vmul.f32 %v627, 0.3275911
    %v644 = vmul.f32 %v628, 0.3275911
    %v645 = vmul.f32 %v629, 0.3275911
    %v646 = vmul.f32 %v630, 0.3275911
    %v647 = vmul.f32 %v631, 0.3275911
    %v648 = vmul.f32 %v632, 0.3275911
    %v649 = vmul.f32 %v633, 0.3275911
    %v650 = vadd.f32 %v634, 1.0
    %v651 = vadd.f32 %v635, 1.0
    %v652 = vadd.f32 %v636, 1.0
    %v653 = vadd.f32 %v637, 1.0
    %v654 = vadd.f32 %v638, 1.0
    %v655 = vadd.f32 %v639, 1.0
    %v656 = vadd.f32 %v640, 1.0
    %v657 = vadd.f32 %v641, 1.0
    %v658 = vadd.f32 %v642, 1.0
    %v659 = vadd.f32 %v643, 1.0
    %v660 = vadd.f32 %v644, 1.0
    %v661 = vadd.f32 %v645, 1.0
    %v662 = vadd.f32 %v646, 1.0
    %v663 = vadd.f32 %v647, 1.0
    %v664 = vadd.f32 %v648, 1.0
    %v665 = vadd.f32 %v649, 1.0
    %v666 = vrcp.pop %v650
    %v667 = vrcp.pop %v651
    %v668 = vrcp.pop %v652
    %v669 = vrcp.pop %v653
    %v670 = vrcp.pop %v654
    %v671 = vrcp.pop %v655
    %v672 = vrcp.pop %v656
    %v673 = vrcp.pop %v657
    %v674 = vrcp.pop %v658
    %v675 = vrcp.pop %v659
    %v676 = vrcp.pop %v660
    %v677 = vrcp.pop %v661
    %v678 = vrcp.pop %v662
    %v679 = vrcp.pop %v663
    %v680 = vrcp.pop %v664
    %v681 = vrcp.pop %v665
    %v682 = vmul.f32 %v650, %v666
    %v683 = vmul.f32 %v651, %v667
    %v684 = vmul.f32 %v652, %v668
    %v685 = vmul.f32 %v653, %v669
    %v686 = vmul.f32 %v654, %v670
    %v687 = vmul.f32 %v655, %v671
    %v688 = vmul.f32 %v656, %v672
    %v689 = vmul.f32 %v657, %v673
    %v690 = vmul.f32 %v658, %v674
    %v691 = vmul.f32 %v659, %v675
    %v692 = vmul.f32 %v660, %v676
    %v693 = vmul.f32 %v661, %v677
    %v694 = vmul.f32 %v662, %v678
    %v695 = vmul.f32 %v663, %v679
    %v696 = vmul.f32 %v664, %v680
    %v697 = vmul.f32 %v665, %v681
    %v698 = vsub.f32 2.0, %v682
    %v699 = vsub.f32 2.0, %v683
    %v700 = vsub.f32 2.0, %v684
    %v701 = vsub.f32 2.0, %v685
    %v702 = vsub.f32 2.0, %v686
    %v703 = vsub.f32 2.0, %v687
    %v704 = vsub.f32 2.0, %v688
    %v705 = vsub.f32 2.0, %v689
    %v706 = vsub.f32 2.0, %v690
    %v707 = vsub.f32 2.0, %v691
    %v708 = vsub.f32 2.0, %v692
    %v709 = vsub.f32 2.0, %v693
    %v710 = vsub.f32 2.0, %v694
    %v711 = vsub.f32 2.0, %v695
    %v712 = vsub.f32 2.0, %v696
    %v713 = vsub.f32 2.0, %v697
    %v714 = vmul.f32 %v666, %v698
    %v715 = vmul.f32 %v667, %v699
    %v716 = vmul.f32 %v668, %v700
    %v717 = vmul.f32 %v669, %v701
    %v718 = vmul.f32 %v670, %v702
    %v719 = vmul.f32 %v671, %v703
    %v720 = vmul.f32 %v672, %v704
    %v721 = vmul.f32 %v673, %v705
    %v722 = vmul.f32 %v674, %v706
    %v723 = vmul.f32 %v675, %v707
    %v724 = vmul.f32 %v676, %v708
    %v725 = vmul.f32 %v677, %v709
    %v726 = vmul.f32 %v678, %v710
    %v727 = vmul.f32 %v679, %v711
    %v728 = vmul.f32 %v680, %v712
    %v729 = vmul.f32 %v681, %v713
    %v730 = vmul.f32 %v714, 1.0614054
    %v731 = vmul.f32 %v715, 1.0614054
    %v732 = vmul.f32 %v716, 1.0614054
    %v733 = vmul.f32 %v717, 1.0614054
    %v734 = vmul.f32 %v718, 1.0614054
    %v735 = vmul.f32 %v719, 1.0614054
    %v736 = vmul.f32 %v720, 1.0614054
    %v737 = vmul.f32 %v721, 1.0614054
    %v738 = vmul.f32 %v722, 1.0614054
    %v739 = vmul.f32 %v723, 1.0614054
    %v740 = vmul.f32 %v724, 1.0614054
    %v741 = vmul.f32 %v725, 1.0614054
    %v742 = vmul.f32 %v726, 1.0614054
    %v743 = vmul.f32 %v727, 1.0614054
    %v744 = vmul.f32 %v728, 1.0614054
    %v745 = vmul.f32 %v729, 1.0614054
    %v746 = vadd.f32 %v730, -1.4531521
    %v747 = vadd.f32 %v731, -1.4531521
    %v748 = vadd.f32 %v732, -1.4531521
    %v749 = vadd.f32 %v733, -1.4531521
    %v750 = vadd.f32 %v734, -1.4531521
    %v751 = vadd.f32 %v735, -1.4531521
    %v752 = vadd.f32 %v736, -1.4531521
    %v753 = vadd.f32 %v737, -1.4531521
    %v754 = vadd.f32 %v738, -1.4531521
    %v755 = vadd.f32 %v739, -1.4531521
    %v756 = vadd.f32 %v740, -1.4531521
    %v757 = vadd.f32 %v741, -1.4531521
    %v758 = vadd.f32 %v742, -1.4531521
    %v759 = vadd.f32 %v743, -1.4531521
    %v760 = vadd.f32 %v744, -1.4531521
    %v761 = vadd.f32 %v745, -1.4531521
    %v762 = vmul.f32 %v746, %v714
    %v763 = vmul.f32 %v747, %v715
    %v764 = vmul.f32 %v748, %v716
    %v765 = vmul.f32 %v749, %v717
    %v766 = vmul.f32 %v750, %v718
    %v767 = vmul.f32 %v751, %v719
    %v768 = vmul.f32 %v752, %v720
    %v769 = vmul.f32 %v753, %v721
    %v770 = vmul.f32 %v754, %v722
    %v771 = vmul.f32 %v755, %v723
    %v772 = vmul.f32 %v756, %v724
    %v773 = vmul.f32 %v757, %v725
    %v774 = vmul.f32 %v758, %v726
    %v775 = vmul.f32 %v759, %v727
    %v776 = vmul.f32 %v760, %v728
    %v777 = vmul.f32 %v761, %v729
    %v778 = vadd.f32 %v762, 1.4214138
    %v779 = vadd.f32 %v763, 1.4214138
    %v780 = vadd.f32 %v764, 1.4214138
    %v781 = vadd.f32 %v765, 1.4214138
    %v782 = vadd.f32 %v766, 1.4214138
    %v783 = vadd.f32 %v767, 1.4214138
    %v784 = vadd.f32 %v768, 1.4214138
    %v785 = vadd.f32 %v769, 1.4214138
    %v786 = vadd.f32 %v770, 1.4214138
    %v787 = vadd.f32 %v771, 1.4214138
    %v788 = vadd.f32 %v772, 1.4214138
    %v789 = vadd.f32 %v773, 1.4214138
    %v790 = vadd.f32 %v774, 1.4214138
    %v791 = vadd.f32 %v775, 1.4214138
    %v792 = vadd.f32 %v776, 1.4214138
    %v793 = vadd.f32 %v777, 1.4214138
    %v794 = vmul.f32 %v778, %v714
    %v795 = vmul.f32 %v779, %v715
    %v796 = vmul.f32 %v780, %v716
    %v797 = vmul.f32 %v781, %v717
    %v798 = vmul.f32 %v782, %v718
    %v799 = vmul.f32 %v783, %v719
    %v800 = vmul.f32 %v784, %v720
    %v801 = vmul.f32 %v785, %v721
    %v802 = vmul.f32 %v786, %v722
    %v803 = vmul.f32 %v787, %v723
    %v804 = vmul.f32 %v788, %v724
    %v805 = vmul.f32 %v789, %v725
    %v806 = vmul.f32 %v790, %v726
    %v807 = vmul.f32 %v791, %v727
    %v808 = vmul.f32 %v792, %v728
    %v809 = vmul.f32 %v793, %v729
    %v810 = vadd.f32 %v794, -0.28449672
    %v811 = vadd.f32 %v795, -0.28449672
    %v812 = vadd.f32 %v796, -0.28449672
    %v813 = vadd.f32 %v797, -0.28449672
    %v814 = vadd.f32 %v798, -0.28449672
    %v815 = vadd.f32 %v799, -0.28449672
    %v816 = vadd.f32 %v800, -0.28449672
    %v817 = vadd.f32 %v801, -0.28449672
    %v818 = vadd.f32 %v802, -0.28449672
    %v819 = vadd.f32 %v803, -0.28449672
    %v820 = vadd.f32 %v804, -0.28449672
    %v821 = vadd.f32 %v805, -0.28449672
    %v822 = vadd.f32 %v806, -0.28449672
    %v823 = vadd.f32 %v807, -0.28449672
    %v824 = vadd.f32 %v808, -0.28449672
    %v825 = vadd.f32 %v809, -0.28449672
    %v826 = vmul.f32 %v810, %v714
    %v827 = vmul.f32 %v811, %v715
    %v828 = vmul.f32 %v812, %v716
    %v829 = vmul.f32 %v813, %v717
    %v830 = vmul.f32 %v814, %v718
    %v831 = vmul.f32 %v815, %v719
    %v832 = vmul.f32 %v816, %v720
    %v833 = vmul.f32 %v817, %v721
    %v834 = vmul.f32 %v818, %v722
    %v835 = vmul.f32 %v819, %v723
    %v836 = vmul.f32 %v820, %v724
    %v837 = vmul.f32 %v821, %v725
    %v838 = vmul.f32 %v822, %v726
    %v839 = vmul.f32 %v823, %v727
    %v840 = vmul.f32 %v824, %v728
    %v841 = vmul.f32 %v825, %v729
    %v842 = vadd.f32 %v826, 0.2548296
    %v843 = vadd.f32 %v827, 0.2548296
    %v844 = vadd.f32 %v828, 0.2548296
    %v845 = vadd.f32 %v829, 0.2548296
    %v846 = vadd.f32 %v830, 0.2548296
    %v847 = vadd.f32 %v831, 0.2548296
    %v848 = vadd.f32 %v832, 0.2548296
    %v849 = vadd.f32 %v833, 0.2548296
    %v850 = vadd.f32 %v834, 0.2548296
    %v851 = vadd.f32 %v835, 0.2548296
    %v852 = vadd.f32 %v836, 0.2548296
    %v853 = vadd.f32 %v837, 0.2548296
    %v854 = vadd.f32 %v838, 0.2548296
    %v855 = vadd.f32 %v839, 0.2548296
    %v856 = vadd.f32 %v840, 0.2548296
    %v857 = vadd.f32 %v841, 0.2548296
    %v858 = vmul.f32 %v842, %v714
    %v859 = vmul.f32 %v843, %v715
    %v860 = vmul.f32 %v844, %v716
    %v861 = vmul.f32 %v845, %v717
    %v862 = vmul.f32 %v846, %v718
    %v863 = vmul.f32 %v847, %v719
    %v864 = vmul.f32 %v848, %v720
    %v865 = vmul.f32 %v849, %v721
    %v866 = vmul.f32 %v850, %v722
    %v867 = vmul.f32 %v851, %v723
    %v868 = vmul.f32 %v852, %v724
    %v869 = vmul.f32 %v853, %v725
    %v870 = vmul.f32 %v854, %v726
    %v871 = vmul.f32 %v855, %v727
    %v872 = vmul.f32 %v856, %v728
    %v873 = vmul.f32 %v857, %v729
    %v874 = vsub.f32 0.0, %v618
    %v875 = vsub.f32 0.0, %v619
    %v876 = vsub.f32 0.0, %v620
    %v877 = vsub.f32 0.0, %v621
    %v878 = vsub.f32 0.0, %v622
    %v879 = vsub.f32 0.0, %v623
    %v880 = vsub.f32 0.0, %v624
    %v881 = vsub.f32 0.0, %v625
    %v882 = vsub.f32 0.0, %v626
    %v883 = vsub.f32 0.0, %v627
    %v884 = vsub.f32 0.0, %v628
    %v885 = vsub.f32 0.0, %v629
    %v886 = vsub.f32 0.0, %v630
    %v887 = vsub.f32 0.0, %v631
    %v888 = vsub.f32 0.0, %v632
    %v889 = vsub.f32 0.0, %v633
    %v890 = vmul.f32 %v874, %v618
    %v891 = vmul.f32 %v875, %v619
    %v892 = vmul.f32 %v876, %v620
    %v893 = vmul.f32 %v877, %v621
    %v894 = vmul.f32 %v878, %v622
    %v895 = vmul.f32 %v879, %v623
    %v896 = vmul.f32 %v880, %v624
    %v897 = vmul.f32 %v881, %v625
    %v898 = vmul.f32 %v882, %v626
    %v899 = vmul.f32 %v883, %v627
    %v900 = vmul.f32 %v884, %v628
    %v901 = vmul.f32 %v885, %v629
    %v902 = vmul.f32 %v886, %v630
    %v903 = vmul.f32 %v887, %v631
    %v904 = vmul.f32 %v888, %v632
    %v905 = vmul.f32 %v889, %v633
    %v906 = vmul.f32 %v890, 1.442695
    %v907 = vpow.pop %v906
    %v908 = vmul.f32 %v891, 1.442695
    %v909 = vpow.pop %v908
    %v910 = vmul.f32 %v892, 1.442695
    %v911 = vpow.pop %v910
    %v912 = vmul.f32 %v893, 1.442695
    %v913 = vpow.pop %v912
    %v914 = vmul.f32 %v894, 1.442695
    %v915 = vpow.pop %v914
    %v916 = vmul.f32 %v895, 1.442695
    %v917 = vpow.pop %v916
    %v918 = vmul.f32 %v896, 1.442695
    %v919 = vpow.pop %v918
    %v920 = vmul.f32 %v897, 1.442695
    %v921 = vpow.pop %v920
    %v922 = vmul.f32 %v898, 1.442695
    %v923 = vpow.pop %v922
    %v924 = vmul.f32 %v899, 1.442695
    %v925 = vpow.pop %v924
    %v926 = vmul.f32 %v900, 1.442695
    %v927 = vpow.pop %v926
    %v928 = vmul.f32 %v901, 1.442695
    %v929 = vpow.pop %v928
    %v930 = vmul.f32 %v902, 1.442695
    %v931 = vpow.pop %v930
    %v932 = vmul.f32 %v903, 1.442695
    %v933 = vpow.pop %v932
    %v934 = vmul.f32 %v904, 1.442695
    %v935 = vpow.pop %v934
    %v936 = vmul.f32 %v905, 1.442695
    %v937 = vpow.pop %v936
    %v938 = vmul.f32 %v858, %v907
    %v939 = vmul.f32 %v859, %v909
    %v940 = vmul.f32 %v860, %v911
    %v941 = vmul.f32 %v861, %v913
    %v942 = vmul.f32 %v862, %v915
    %v943 = vmul.f32 %v863, %v917
    %v944 = vmul.f32 %v864, %v919
    %v945 = vmul.f32 %v865, %v921
    %v946 = vmul.f32 %v866, %v923
    %v947 = vmul.f32 %v867, %v925
    %v948 = vmul.f32 %v868, %v927
    %v949 = vmul.f32 %v869, %v929
    %v950 = vmul.f32 %v870, %v931
    %v951 = vmul.f32 %v871, %v933
    %v952 = vmul.f32 %v872, %v935
    %v953 = vmul.f32 %v873, %v937
    %v954 = vsub.f32 1.0, %v938
    %v955 = vsub.f32 1.0, %v939
    %v956 = vsub.f32 1.0, %v940
    %v957 = vsub.f32 1.0, %v941
    %v958 = vsub.f32 1.0, %v942
    %v959 = vsub.f32 1.0, %v943
    %v960 = vsub.f32 1.0, %v944
    %v961 = vsub.f32 1.0, %v945
    %v962 = vsub.f32 1.0, %v946
    %v963 = vsub.f32 1.0, %v947
    %v964 = vsub.f32 1.0, %v948
    %v965 = vsub.f32 1.0, %v949
    %v966 = vsub.f32 1.0, %v950
    %v967 = vsub.f32 1.0, %v951
    %v968 = vsub.f32 1.0, %v952
    %v969 = vsub.f32 1.0, %v953
    %vm970 = vcmp.ge.f32.partialorder %v465, 0.0
    %vm971 = vcmp.ge.f32.partialorder %v467, 0.0
    %vm972 = vcmp.ge.f32.partialorder %v508, 0.0
    %vm973 = vcmp.ge.f32.partialorder %v510, 0.0
    %vm974 = vcmp.ge.f32.partialorder %v551, 0.0
    %vm975 = vcmp.ge.f32.partialorder %v553, 0.0
    %vm976 = vcmp.ge.f32.partialorder %v594, 0.0
    %vm977 = vcmp.ge.f32.partialorder %v596, 0.0
    %vm978 = vcmp.ge.f32.partialorder %v469, 0.0
    %vm979 = vcmp.ge.f32.partialorder %v471, 0.0
    %vm980 = vcmp.ge.f32.partialorder %v512, 0.0
    %vm981 = vcmp.ge.f32.partialorder %v514, 0.0
    %vm982 = vcmp.ge.f32.partialorder %v555, 0.0
    %vm983 = vcmp.ge.f32.partialorder %v557, 0.0
    %vm984 = vcmp.ge.f32.partialorder %v598, 0.0
    %vm985 = vcmp.ge.f32.partialorder %v600, 0.0
    %v986 = vsub.f32 0.0, %v954
    %v987 = vsub.f32 0.0, %v955
    %v988 = vsub.f32 0.0, %v956
    %v989 = vsub.f32 0.0, %v957
    %v990 = vsub.f32 0.0, %v958
    %v991 = vsub.f32 0.0, %v959
    %v992 = vsub.f32 0.0, %v960
    %v993 = vsub.f32 0.0, %v961
    %v994 = vsub.f32 0.0, %v962
    %v995 = vsub.f32 0.0, %v963
    %v996 = vsub.f32 0.0, %v964
    %v997 = vsub.f32 0.0, %v965
    %v998 = vsub.f32 0.0, %v966
    %v999 = vsub.f32 0.0, %v967
    %v1000 = vsub.f32 0.0, %v968
    %v1001 = vsub.f32 0.0, %v969
    %v1002 = vsel %vm970, %v954, %v986
    %v1003 = vsel %vm971, %v955, %v987
    %v1004 = vsel %vm972, %v956, %v988
    %v1005 = vsel %vm973, %v957, %v989
    %v1006 = vsel %vm974, %v958, %v990
    %v1007 = vsel %vm975, %v959, %v991
    %v1008 = vsel %vm976, %v960, %v992
    %v1009 = vsel %vm977, %v961, %v993
    %v1010 = vsel %vm978, %v962, %v994
    %v1011 = vsel %vm979, %v963, %v995
    %v1012 = vsel %vm980, %v964, %v996
    %v1013 = vsel %vm981, %v965, %v997
    %v1014 = vsel %vm982, %v966, %v998
    %v1015 = vsel %vm983, %v967, %v999
    %v1016 = vsel %vm984, %v968, %v1000
    %v1017 = vsel %vm985, %v969, %v1001
    %v1018 = vmul.f32 %v465, 0.5
    %v1019 = vmul.f32 %v467, 0.5
    %v1020 = vmul.f32 %v508, 0.5
    %v1021 = vmul.f32 %v510, 0.5
    %v1022 = vmul.f32 %v551, 0.5
    %v1023 = vmul.f32 %v553, 0.5
    %v1024 = vmul.f32 %v594, 0.5
    %v1025 = vmul.f32 %v596, 0.5
    %v1026 = vmul.f32 %v469, 0.5
    %v1027 = vmul.f32 %v471, 0.5
    %v1028 = vmul.f32 %v512, 0.5
    %v1029 = vmul.f32 %v514, 0.5
    %v1030 = vmul.f32 %v555, 0.5
    %v1031 = vmul.f32 %v557, 0.5
    %v1032 = vmul.f32 %v598, 0.5
    %v1033 = vmul.f32 %v600, 0.5
    %v1034 = vadd.f32 %v1002, 1.0
    %v1035 = vadd.f32 %v1003, 1.0
    %v1036 = vadd.f32 %v1004, 1.0
    %v1037 = vadd.f32 %v1005, 1.0
    %v1038 = vadd.f32 %v1006, 1.0
    %v1039 = vadd.f32 %v1007, 1.0
    %v1040 = vadd.f32 %v1008, 1.0
    %v1041 = vadd.f32 %v1009, 1.0
    %v1042 = vadd.f32 %v1010, 1.0
    %v1043 = vadd.f32 %v1011, 1.0
    %v1044 = vadd.f32 %v1012, 1.0
    %v1045 = vadd.f32 %v1013, 1.0
    %v1046 = vadd.f32 %v1014, 1.0
    %v1047 = vadd.f32 %v1015, 1.0
    %v1048 = vadd.f32 %v1016, 1.0
    %v1049 = vadd.f32 %v1017, 1.0
    %v1050 = vmul.f32 %v1018, %v1034
    %v1051 = vmul.f32 %v1019, %v1035
    %v1052 = vmul.f32 %v1020, %v1036
    %v1053 = vmul.f32 %v1021, %v1037
    %v1054 = vmul.f32 %v1022, %v1038
    %v1055 = vmul.f32 %v1023, %v1039
    %v1056 = vmul.f32 %v1024, %v1040
    %v1057 = vmul.f32 %v1025, %v1041
    %v1058 = vmul.f32 %v1026, %v1042
    %v1059 = vmul.f32 %v1027, %v1043
    %v1060 = vmul.f32 %v1028, %v1044
    %v1061 = vmul.f32 %v1029, %v1045
    %v1062 = vmul.f32 %v1030, %v1046
    %v1063 = vmul.f32 %v1031, %v1047
    %v1064 = vmul.f32 %v1032, %v1048
    %v1065 = vmul.f32 %v1033, %v1049
    %v1066 = vpack.c.bf16 %v287, %v286
    %v1067 = vld [vmem:[%s5] sm:$0xff]
    %v1068 = vld [vmem:[%s5 + $0x8] sm:$0xff]
    %v1069 = vld [vmem:[%s5 + $0x10] sm:$0xff]
    %v1070 = vld [vmem:[%s5 + $0x18] sm:$0xff]
    %v1071 = vld [vmem:[%s5 + $0x20] sm:$0xf]
    %v1077 = vunpack.c.l.b16 %v1067
    %v1078 = vunpack.c.h.b16 %v1067
    %v1079 = vunpack.c.l.b16 %v1068
    %v1080 = vunpack.c.h.b16 %v1068
    %v1081 = vunpack.c.l.b16 %v1069
    %v1082 = vunpack.c.h.b16 %v1069
    %v1083 = vunpack.c.l.b16 %v1070
    %v1084 = vunpack.c.h.b16 %v1070
    %v1085 = vunpack.c.l.b16 %v1071
    %v1086 = vpack.c.b16 %v1077, %v1077
    %v1087 = vpack.c.b16 %v1078, %v1078
    %v1088 = vpack.c.b16 %v1079, %v1079
    %v1089 = vpack.c.b16 %v1080, %v1080
    %v1090 = vpack.c.b16 %v1081, %v1081
    %v1091 = vpack.c.b16 %v1082, %v1082
    %v1092 = vpack.c.b16 %v1083, %v1083
    %v1093 = vpack.c.b16 %v1084, %v1084
    %v1094 = vpack.c.b16 %v1085, %v1085
    %v1096 = vsel %vm116, %v1066, 0
    %vm1098 = vcmask 1043456
    %v1100 = vsel %vm1098, %v1086, 0
    %v1103 = vsel %vm1098, %v1087, 0
    %v1106 = vsel %vm1098, %v1088, 0
    %v1109 = vsel %vm1098, %v1089, 0
    %v1112 = vsel %vm1098, %v1090, 0
    %v1115 = vsel %vm1098, %v1091, 0
    %v1118 = vsel %vm1098, %v1092, 0
    %v1121 = vsel %vm1098, %v1093, 0
    %v1124 = vsel %vm1098, %v1094, 0
    %1126 = vmatprep.subr.bf16.mxu0 %v1103
    %1127 = vmatpush1.bf16.msra.mxu0 %v1100
    %1128 = vmatprep.subr.bf16.mxu0 0
    %1129 = vmatpush1.bf16.msra.mxu0 0
    %1130 = vmatprep.subr.bf16.mxu0 0
    %1131 = vmatpush1.bf16.msra.mxu0 0
    %1132 = vmatprep.subr.bf16.mxu0 0
    %1133 = vmatpush1.bf16.msra.mxu0 0
    %1134 = vmatprep.subr.bf16.mxu0 0
    %1135 = vmatpush1.bf16.msra.mxu0 0
    %1136 = vmatprep.subr.bf16.mxu0 0
    %1137 = vmatpush1.bf16.msra.mxu0 0
    %1138 = vmatprep.subr.bf16.mxu0 0
    %1139 = vmatpush1.bf16.msra.mxu0 0
    %1140 = vmatprep.subr.bf16.mxu0 0
    %1141 = vmatpush1.bf16.msra.mxu0 0
    %1142 = vmatprep.subr.bf16.mxu0 0
    %1143 = vmatpush1.bf16.msra.mxu0 0
    %1144 = vmatprep.subr.bf16.mxu0 0
    %1145 = vmatpush1.bf16.msra.mxu0 0
    %1146 = vmatprep.subr.bf16.mxu0 0
    %1147 = vmatpush1.bf16.msra.mxu0 0
    %1148 = vmatprep.subr.bf16.mxu0 0
    %1149 = vmatpush1.bf16.msra.mxu0 0
    %1150 = vmatprep.subr.bf16.mxu0 0
    %1151 = vmatpush1.bf16.msra.mxu0 0
    %1152 = vmatprep.subr.bf16.mxu0 0
    %1153 = vmatpush1.bf16.msra.mxu0 0
    %1154 = vmatprep.subr.bf16.mxu0 0
    %1155 = vmatpush1.bf16.msra.mxu0 0
    %1156 = vmatprep.subr.bf16.mxu0 0
    %1157 = vmatpush1.bf16.msra.mxu0 0
    %1158 = vmatprep.mubr.bf16.mxu0 0
    %1159 = vmatmul.mubr.bf16.gmra.mrb[0].mxu0 %v1096
    %v1160 = vpop.f32.mrb[0].mxu0
    %v1161 = vadd.f32 0.0, %v1160
    %v1162 = vpop.f32.mrb[0].mxu0
    %v1163 = vadd.f32 0.0, %v1162
    %v1164 = vpop.f32.mrb[0].mxu0
    %v1165 = vadd.f32 0.0, %v1164
    %v1166 = vpop.f32.mrb[0].mxu0
    %v1167 = vadd.f32 0.0, %v1166
    %1168 = vdwg.mxu0
    %1169 = vmatprep.subr.bf16.mxu0 %v1109
    %1170 = vmatpush1.bf16.msra.mxu0 %v1106
    %1171 = vmatprep.subr.bf16.mxu0 0
    %1172 = vmatpush1.bf16.msra.mxu0 0
    %1173 = vmatprep.subr.bf16.mxu0 0
    %1174 = vmatpush1.bf16.msra.mxu0 0
    %1175 = vmatprep.subr.bf16.mxu0 0
    %1176 = vmatpush1.bf16.msra.mxu0 0
    %1177 = vmatprep.subr.bf16.mxu0 0
    %1178 = vmatpush1.bf16.msra.mxu0 0
    %1179 = vmatprep.subr.bf16.mxu0 0
    %1180 = vmatpush1.bf16.msra.mxu0 0
    %1181 = vmatprep.subr.bf16.mxu0 0
    %1182 = vmatpush1.bf16.msra.mxu0 0
    %1183 = vmatprep.subr.bf16.mxu0 0
    %1184 = vmatpush1.bf16.msra.mxu0 0
    %1185 = vmatprep.subr.bf16.mxu0 0
    %1186 = vmatpush1.bf16.msra.mxu0 0
    %1187 = vmatprep.subr.bf16.mxu0 0
    %1188 = vmatpush1.bf16.msra.mxu0 0
    %1189 = vmatprep.subr.bf16.mxu0 0
    %1190 = vmatpush1.bf16.msra.mxu0 0
    %1191 = vmatprep.subr.bf16.mxu0 0
    %1192 = vmatpush1.bf16.msra.mxu0 0
    %1193 = vmatprep.subr.bf16.mxu0 0
    %1194 = vmatpush1.bf16.msra.mxu0 0
    %1195 = vmatprep.subr.bf16.mxu0 0
    %1196 = vmatpush1.bf16.msra.mxu0 0
    %1197 = vmatprep.subr.bf16.mxu0 0
    %1198 = vmatpush1.bf16.msra.mxu0 0
    %1199 = vmatprep.subr.bf16.mxu0 0
    %1200 = vmatpush1.bf16.msra.mxu0 0
    %1201 = vmatprep.mubr.bf16.mxu0 0
    %1202 = vmatmul.mubr.bf16.gmra.mrb[0].mxu0 %v1096
    %v1203 = vpop.f32.mrb[0].mxu0
    %v1204 = vadd.f32 0.0, %v1203
    %v1205 = vpop.f32.mrb[0].mxu0
    %v1206 = vadd.f32 0.0, %v1205
    %v1207 = vpop.f32.mrb[0].mxu0
    %v1208 = vadd.f32 0.0, %v1207
    %v1209 = vpop.f32.mrb[0].mxu0
    %v1210 = vadd.f32 0.0, %v1209
    %1211 = vdwg.mxu0
    %1212 = vmatprep.subr.bf16.mxu0 %v1115
    %1213 = vmatpush1.bf16.msra.mxu0 %v1112
    %1214 = vmatprep.subr.bf16.mxu0 0
    %1215 = vmatpush1.bf16.msra.mxu0 0
    %1216 = vmatprep.subr.bf16.mxu0 0
    %1217 = vmatpush1.bf16.msra.mxu0 0
    %1218 = vmatprep.subr.bf16.mxu0 0
    %1219 = vmatpush1.bf16.msra.mxu0 0
    %1220 = vmatprep.subr.bf16.mxu0 0
    %1221 = vmatpush1.bf16.msra.mxu0 0
    %1222 = vmatprep.subr.bf16.mxu0 0
    %1223 = vmatpush1.bf16.msra.mxu0 0
    %1224 = vmatprep.subr.bf16.mxu0 0
    %1225 = vmatpush1.bf16.msra.mxu0 0
    %1226 = vmatprep.subr.bf16.mxu0 0
    %1227 = vmatpush1.bf16.msra.mxu0 0
    %1228 = vmatprep.subr.bf16.mxu0 0
    %1229 = vmatpush1.bf16.msra.mxu0 0
    %1230 = vmatprep.subr.bf16.mxu0 0
    %1231 = vmatpush1.bf16.msra.mxu0 0
    %1232 = vmatprep.subr.bf16.mxu0 0
    %1233 = vmatpush1.bf16.msra.mxu0 0
    %1234 = vmatprep.subr.bf16.mxu0 0
    %1235 = vmatpush1.bf16.msra.mxu0 0
    %1236 = vmatprep.subr.bf16.mxu0 0
    %1237 = vmatpush1.bf16.msra.mxu0 0
    %1238 = vmatprep.subr.bf16.mxu0 0
    %1239 = vmatpush1.bf16.msra.mxu0 0
    %1240 = vmatprep.subr.bf16.mxu0 0
    %1241 = vmatpush1.bf16.msra.mxu0 0
    %1242 = vmatprep.subr.bf16.mxu0 0
    %1243 = vmatpush1.bf16.msra.mxu0 0
    %1244 = vmatprep.mubr.bf16.mxu0 0
    %1245 = vmatmul.mubr.bf16.gmra.mrb[0].mxu0 %v1096
    %v1246 = vpop.f32.mrb[0].mxu0
    %v1247 = vadd.f32 0.0, %v1246
    %v1248 = vpop.f32.mrb[0].mxu0
    %v1249 = vadd.f32 0.0, %v1248
    %v1250 = vpop.f32.mrb[0].mxu0
    %v1251 = vadd.f32 0.0, %v1250
    %v1252 = vpop.f32.mrb[0].mxu0
    %v1253 = vadd.f32 0.0, %v1252
    %1254 = vdwg.mxu0
    %1255 = vmatprep.subr.bf16.mxu0 %v1121
    %1256 = vmatpush1.bf16.msra.mxu0 %v1118
    %1257 = vmatprep.subr.bf16.mxu0 0
    %1258 = vmatpush1.bf16.msra.mxu0 0
    %1259 = vmatprep.subr.bf16.mxu0 0
    %1260 = vmatpush1.bf16.msra.mxu0 0
    %1261 = vmatprep.subr.bf16.mxu0 0
    %1262 = vmatpush1.bf16.msra.mxu0 0
    %1263 = vmatprep.subr.bf16.mxu0 0
    %1264 = vmatpush1.bf16.msra.mxu0 0
    %1265 = vmatprep.subr.bf16.mxu0 0
    %1266 = vmatpush1.bf16.msra.mxu0 0
    %1267 = vmatprep.subr.bf16.mxu0 0
    %1268 = vmatpush1.bf16.msra.mxu0 0
    %1269 = vmatprep.subr.bf16.mxu0 0
    %1270 = vmatpush1.bf16.msra.mxu0 0
    %1271 = vmatprep.subr.bf16.mxu0 0
    %1272 = vmatpush1.bf16.msra.mxu0 0
    %1273 = vmatprep.subr.bf16.mxu0 0
    %1274 = vmatpush1.bf16.msra.mxu0 0
    %1275 = vmatprep.subr.bf16.mxu0 0
    %1276 = vmatpush1.bf16.msra.mxu0 0
    %1277 = vmatprep.subr.bf16.mxu0 0
    %1278 = vmatpush1.bf16.msra.mxu0 0
    %1279 = vmatprep.subr.bf16.mxu0 0
    %1280 = vmatpush1.bf16.msra.mxu0 0
    %1281 = vmatprep.subr.bf16.mxu0 0
    %1282 = vmatpush1.bf16.msra.mxu0 0
    %1283 = vmatprep.subr.bf16.mxu0 0
    %1284 = vmatpush1.bf16.msra.mxu0 0
    %1285 = vmatprep.subr.bf16.mxu0 0
    %1286 = vmatpush1.bf16.msra.mxu0 0
    %1287 = vmatprep.mubr.bf16.mxu0 0
    %1288 = vmatmul.mubr.bf16.gmra.mrb[0].mxu0 %v1096
    %v1289 = vpop.f32.mrb[0].mxu0
    %v1290 = vadd.f32 0.0, %v1289
    %v1291 = vpop.f32.mrb[0].mxu0
    %v1292 = vadd.f32 0.0, %v1291
    %v1293 = vpop.f32.mrb[0].mxu0
    %v1294 = vadd.f32 0.0, %v1293
    %v1295 = vpop.f32.mrb[0].mxu0
    %v1296 = vadd.f32 0.0, %v1295
    %1297 = vdwg.mxu0
    %1298 = vmatprep.subr.bf16.mxu0 0
    %1299 = vmatpush1.bf16.msra.mxu0 %v1124
    %1300 = vmatprep.subr.bf16.mxu0 0
    %1301 = vmatpush1.bf16.msra.mxu0 0
    %1302 = vmatprep.subr.bf16.mxu0 0
    %1303 = vmatpush1.bf16.msra.mxu0 0
    %1304 = vmatprep.subr.bf16.mxu0 0
    %1305 = vmatpush1.bf16.msra.mxu0 0
    %1306 = vmatprep.subr.bf16.mxu0 0
    %1307 = vmatpush1.bf16.msra.mxu0 0
    %1308 = vmatprep.subr.bf16.mxu0 0
    %1309 = vmatpush1.bf16.msra.mxu0 0
    %1310 = vmatprep.subr.bf16.mxu0 0
    %1311 = vmatpush1.bf16.msra.mxu0 0
    %1312 = vmatprep.subr.bf16.mxu0 0
    %1313 = vmatpush1.bf16.msra.mxu0 0
    %1314 = vmatprep.subr.bf16.mxu0 0
    %1315 = vmatpush1.bf16.msra.mxu0 0
    %1316 = vmatprep.subr.bf16.mxu0 0
    %1317 = vmatpush1.bf16.msra.mxu0 0
    %1318 = vmatprep.subr.bf16.mxu0 0
    %1319 = vmatpush1.bf16.msra.mxu0 0
    %1320 = vmatprep.subr.bf16.mxu0 0
    %1321 = vmatpush1.bf16.msra.mxu0 0
    %1322 = vmatprep.subr.bf16.mxu0 0
    %1323 = vmatpush1.bf16.msra.mxu0 0
    %1324 = vmatprep.subr.bf16.mxu0 0
    %1325 = vmatpush1.bf16.msra.mxu0 0
    %1326 = vmatprep.subr.bf16.mxu0 0
    %1327 = vmatpush1.bf16.msra.mxu0 0
    %1328 = vmatprep.subr.bf16.mxu0 0
    %1329 = vmatpush1.bf16.msra.mxu0 0
    %1330 = vmatprep.mubr.bf16.mxu0 0
    %1331 = vmatmul.mubr.bf16.gmra.mrb[0].mxu0 %v1096
    %v1332 = vpop.f32.mrb[0].mxu0
    %v1333 = vadd.f32 0.0, %v1332
    %v1334 = vpop.f32.mrb[0].mxu0
    %v1335 = vpop.f32.mrb[0].mxu0
    %v1336 = vadd.f32 0.0, %v1335
    %v1337 = vpop.f32.mrb[0].mxu0
    %1338 = vdwg.mxu0
    %v1339 = vmul.f32 %v1050, %v1161
    %v1340 = vmul.f32 %v1051, %v1163
    %v1341 = vmul.f32 %v1052, %v1204
    %v1342 = vmul.f32 %v1053, %v1206
    %v1343 = vmul.f32 %v1054, %v1247
    %v1344 = vmul.f32 %v1055, %v1249
    %v1345 = vmul.f32 %v1056, %v1290
    %v1346 = vmul.f32 %v1057, %v1292
    %v1347 = vmul.f32 %v1058, %v1165
    %v1348 = vmul.f32 %v1059, %v1167
    %v1349 = vmul.f32 %v1060, %v1208
    %v1350 = vmul.f32 %v1061, %v1210
    %v1351 = vmul.f32 %v1062, %v1251
    %v1352 = vmul.f32 %v1063, %v1253
    %v1353 = vmul.f32 %v1064, %v1294
    %v1354 = vmul.f32 %v1065, %v1296
    %v1355 = vpack.c.bf16 %v1347, %v1339
    %v1356 = vpack.c.bf16 %v1348, %v1340
    %v1357 = vpack.c.bf16 %v1349, %v1341
    %v1358 = vpack.c.bf16 %v1350, %v1342
    %v1359 = vpack.c.bf16 %v1351, %v1343
    %v1360 = vpack.c.bf16 %v1352, %v1344
    %v1361 = vpack.c.bf16 %v1353, %v1345
    %v1362 = vpack.c.bf16 %v1354, %v1346
    %v1363 = vld [vmem:[%s4] sm:$0xf]
    %v1364 = vld [vmem:[%s4 + $0x4] sm:$0xf]
    %v1365 = vld [vmem:[%s4 + $0x8] sm:$0xf]
    %v1366 = vld [vmem:[%s4 + $0xc] sm:$0xf]
    %v1367 = vld [vmem:[%s4 + $0x10] sm:$0xf]
    %v1368 = vld [vmem:[%s4 + $0x14] sm:$0xf]
    %v1369 = vld [vmem:[%s4 + $0x18] sm:$0xf]
    %v1370 = vld [vmem:[%s4 + $0x1c] sm:$0xf]
    %v1371 = vld [vmem:[%s4 + $0x20] sm:$0xf]
    %v1372 = vld [vmem:[%s4 + $0x24] sm:$0xf]
    %v1373 = vld [vmem:[%s4 + $0x28] sm:$0xf]
    %v1374 = vld [vmem:[%s4 + $0x2c] sm:$0xf]
    %v1375 = vld [vmem:[%s4 + $0x30] sm:$0xf]
    %v1376 = vld [vmem:[%s4 + $0x34] sm:$0xf]
    %v1377 = vld [vmem:[%s4 + $0x38] sm:$0xf]
    %v1378 = vld [vmem:[%s4 + $0x3c] sm:$0xf]
    %v1379 = vld [vmem:[%s4 + $0x40] sm:$0xf]
    %v1380 = vld [vmem:[%s4 + $0x44] sm:$0xf]
    %v1381 = vld [vmem:[%s4 + $0x48] sm:$0xf]
    %v1382 = vld [vmem:[%s4 + $0x4c] sm:$0xf]
    %v1383 = vld [vmem:[%s4 + $0x50] sm:$0xf]
    %v1384 = vld [vmem:[%s4 + $0x54] sm:$0xf]
    %v1385 = vld [vmem:[%s4 + $0x58] sm:$0xf]
    %v1386 = vld [vmem:[%s4 + $0x5c] sm:$0xf]
    %v1387 = vld [vmem:[%s4 + $0x60] sm:$0xf]
    %v1388 = vld [vmem:[%s4 + $0x64] sm:$0xf]
    %v1389 = vld [vmem:[%s4 + $0x68] sm:$0xf]
    %v1390 = vld [vmem:[%s4 + $0x6c] sm:$0xf]
    %v1391 = vld [vmem:[%s4 + $0x70] sm:$0xf]
    %v1392 = vld [vmem:[%s4 + $0x74] sm:$0xf]
    %v1393 = vld [vmem:[%s4 + $0x78] sm:$0xf]
    %v1394 = vld [vmem:[%s4 + $0x7c] sm:$0xf]
    %v1395 = vld [vmem:[%s4 + $0x80] sm:$0xf]
    %v1396 = vld [vmem:[%s4 + $0x84] sm:$0xf]
    %v1397 = vld [vmem:[%s4 + $0x88] sm:$0xf]
    %v1398 = vld [vmem:[%s4 + $0x8c] sm:$0xf]
    %v1399 = vld [vmem:[%s4 + $0x90] sm:$0xf]
    %v1400 = vld [vmem:[%s4 + $0x94] sm:$0xf]
    %v1401 = vld [vmem:[%s4 + $0x98] sm:$0xf]
    %v1402 = vld [vmem:[%s4 + $0x9c] sm:$0xf]
    %v1403 = vld [vmem:[%s4 + $0xa0] sm:$0xf]
    %v1404 = vld [vmem:[%s4 + $0xa4] sm:$0xf]
    %v1405 = vld [vmem:[%s4 + $0xa8] sm:$0xf]
    %v1406 = vld [vmem:[%s4 + $0xac] sm:$0xf]
    %v1407 = vld [vmem:[%s4 + $0xb0] sm:$0xf]
    %v1408 = vld [vmem:[%s4 + $0xb4] sm:$0xf]
    %v1409 = vld [vmem:[%s4 + $0xb8] sm:$0xf]
    %v1410 = vld [vmem:[%s4 + $0xbc] sm:$0xf]
    %v1411 = vld [vmem:[%s4 + $0xc0] sm:$0xf]
    %v1412 = vld [vmem:[%s4 + $0xc4] sm:$0xf]
    %v1413 = vld [vmem:[%s4 + $0xc8] sm:$0xf]
    %v1414 = vld [vmem:[%s4 + $0xcc] sm:$0xf]
    %v1415 = vld [vmem:[%s4 + $0xd0] sm:$0xf]
    %v1416 = vld [vmem:[%s4 + $0xd4] sm:$0xf]
    %v1417 = vld [vmem:[%s4 + $0xd8] sm:$0xf]
    %v1418 = vld [vmem:[%s4 + $0xdc] sm:$0xf]
    %v1419 = vld [vmem:[%s4 + $0xe0] sm:$0xf]
    %v1420 = vld [vmem:[%s4 + $0xe4] sm:$0xf]
    %v1421 = vld [vmem:[%s4 + $0xe8] sm:$0xf]
    %v1422 = vld [vmem:[%s4 + $0xec] sm:$0xf]
    %v1423 = vld [vmem:[%s4 + $0xf0] sm:$0xf]
    %v1424 = vld [vmem:[%s4 + $0xf4] sm:$0xf]
    %v1425 = vld [vmem:[%s4 + $0xf8] sm:$0xf]
    %v1426 = vld [vmem:[%s4 + $0xfc] sm:$0xf]
    %v1427 = vld [vmem:[%s4 + $0x100] sm:$0xf]
    %v1428 = vld [vmem:[%s4 + $0x104] sm:$0xf]
    %v1429 = vld [vmem:[%s4 + $0x108] sm:$0xf]
    %v1430 = vld [vmem:[%s4 + $0x10c] sm:$0xf]
    %v1431 = vld [vmem:[%s4 + $0x110] sm:$0xf]
    %v1432 = vld [vmem:[%s4 + $0x114] sm:$0xf]
    %v1433 = vld [vmem:[%s4 + $0x118] sm:$0xf]
    %v1434 = vld [vmem:[%s4 + $0x11c] sm:$0xf]
    %v1435 = vld [vmem:[%s4 + $0x120] sm:$0xf]
    %v1436 = vld [vmem:[%s4 + $0x124] sm:$0xf]
    %v1437 = vld [vmem:[%s4 + $0x128] sm:$0xf]
    %v1438 = vld [vmem:[%s4 + $0x12c] sm:$0xf]
    %v1439 = vld [vmem:[%s4 + $0x130] sm:$0xf]
    %v1440 = vld [vmem:[%s4 + $0x134] sm:$0xf]
    %v1441 = vld [vmem:[%s4 + $0x138] sm:$0xf]
    %v1442 = vld [vmem:[%s4 + $0x13c] sm:$0xf]
    %v1443 = vld [vmem:[%s4 + $0x140] sm:$0xf]
    %v1444 = vld [vmem:[%s4 + $0x144] sm:$0xf]
    %v1445 = vld [vmem:[%s4 + $0x148] sm:$0xf]
    %v1446 = vld [vmem:[%s4 + $0x14c] sm:$0xf]
    %v1447 = vld [vmem:[%s4 + $0x150] sm:$0xf]
    %v1448 = vld [vmem:[%s4 + $0x154] sm:$0xf]
    %v1449 = vld [vmem:[%s4 + $0x158] sm:$0xf]
    %v1450 = vld [vmem:[%s4 + $0x15c] sm:$0xf]
    %v1451 = vld [vmem:[%s4 + $0x160] sm:$0xf]
    %v1452 = vld [vmem:[%s4 + $0x164] sm:$0xf]
    %v1453 = vld [vmem:[%s4 + $0x168] sm:$0xf]
    %v1454 = vld [vmem:[%s4 + $0x16c] sm:$0xf]
    %v1455 = vld [vmem:[%s4 + $0x170] sm:$0xf]
    %v1456 = vld [vmem:[%s4 + $0x174] sm:$0xf]
    %v1457 = vld [vmem:[%s4 + $0x178] sm:$0xf]
    %v1458 = vld [vmem:[%s4 + $0x17c] sm:$0xf]
    %v1459 = vld [vmem:[%s4 + $0x180] sm:$0xf]
    %v1460 = vld [vmem:[%s4 + $0x184] sm:$0xf]
    %v1461 = vld [vmem:[%s4 + $0x188] sm:$0xf]
    %v1462 = vld [vmem:[%s4 + $0x18c] sm:$0xf]
    %v1463 = vld [vmem:[%s4 + $0x190] sm:$0xf]
    %v1464 = vld [vmem:[%s4 + $0x194] sm:$0xf]
    %v1465 = vld [vmem:[%s4 + $0x198] sm:$0xf]
    %v1466 = vld [vmem:[%s4 + $0x19c] sm:$0xf]
    %v1467 = vld [vmem:[%s4 + $0x1a0] sm:$0xf]
    %v1468 = vld [vmem:[%s4 + $0x1a4] sm:$0xf]
    %v1469 = vld [vmem:[%s4 + $0x1a8] sm:$0xf]
    %v1470 = vld [vmem:[%s4 + $0x1ac] sm:$0xf]
    %v1471 = vld [vmem:[%s4 + $0x1b0] sm:$0xf]
    %v1472 = vld [vmem:[%s4 + $0x1b4] sm:$0xf]
    %v1473 = vld [vmem:[%s4 + $0x1b8] sm:$0xf]
    %v1474 = vld [vmem:[%s4 + $0x1bc] sm:$0xf]
    %v1475 = vld [vmem:[%s4 + $0x1c0] sm:$0xf]
    %v1476 = vld [vmem:[%s4 + $0x1c4] sm:$0xf]
    %v1477 = vld [vmem:[%s4 + $0x1c8] sm:$0xf]
    %v1478 = vld [vmem:[%s4 + $0x1cc] sm:$0xf]
    %v1479 = vld [vmem:[%s4 + $0x1d0] sm:$0xf]
    %v1480 = vld [vmem:[%s4 + $0x1d4] sm:$0xf]
    %v1481 = vld [vmem:[%s4 + $0x1d8] sm:$0xf]
    %v1482 = vld [vmem:[%s4 + $0x1dc] sm:$0xf]
    %v1483 = vld [vmem:[%s4 + $0x1e0] sm:$0xf]
    %v1484 = vld [vmem:[%s4 + $0x1e4] sm:$0xf]
    %v1485 = vld [vmem:[%s4 + $0x1e8] sm:$0xf]
    %v1486 = vld [vmem:[%s4 + $0x1ec] sm:$0xf]
    %v1487 = vld [vmem:[%s4 + $0x1f0] sm:$0xf]
    %v1488 = vld [vmem:[%s4 + $0x1f4] sm:$0xf]
    %v1489 = vld [vmem:[%s4 + $0x1f8] sm:$0xf]
    %v1490 = vld [vmem:[%s4 + $0x1fc] sm:$0xf]
    %v1619 = vunpack.c.l.b16 %v1363
    %v1620 = vunpack.c.l.b16 %v1364
    %v1621 = vunpack.c.l.b16 %v1365
    %v1622 = vunpack.c.l.b16 %v1366
    %v1623 = vunpack.c.l.b16 %v1367
    %v1624 = vunpack.c.l.b16 %v1368
    %v1625 = vunpack.c.l.b16 %v1369
    %v1626 = vunpack.c.l.b16 %v1370
    %v1627 = vunpack.c.l.b16 %v1371
    %v1628 = vunpack.c.l.b16 %v1372
    %v1629 = vunpack.c.l.b16 %v1373
    %v1630 = vunpack.c.l.b16 %v1374
    %v1631 = vunpack.c.l.b16 %v1375
    %v1632 = vunpack.c.l.b16 %v1376
    %v1633 = vunpack.c.l.b16 %v1377
    %v1634 = vunpack.c.l.b16 %v1378
    %v1635 = vunpack.c.l.b16 %v1379
    %v1636 = vunpack.c.l.b16 %v1380
    %v1637 = vunpack.c.l.b16 %v1381
    %v1638 = vunpack.c.l.b16 %v1382
    %v1639 = vunpack.c.l.b16 %v1383
    %v1640 = vunpack.c.l.b16 %v1384
    %v1641 = vunpack.c.l.b16 %v1385
    %v1642 = vunpack.c.l.b16 %v1386
    %v1643 = vunpack.c.l.b16 %v1387
    %v1644 = vunpack.c.l.b16 %v1388
    %v1645 = vunpack.c.l.b16 %v1389
    %v1646 = vunpack.c.l.b16 %v1390
    %v1647 = vunpack.c.l.b16 %v1391
    %v1648 = vunpack.c.l.b16 %v1392
    %v1649 = vunpack.c.l.b16 %v1393
    %v1650 = vunpack.c.l.b16 %v1394
    %v1651 = vunpack.c.l.b16 %v1395
    %v1652 = vunpack.c.l.b16 %v1396
    %v1653 = vunpack.c.l.b16 %v1397
    %v1654 = vunpack.c.l.b16 %v1398
    %v1655 = vunpack.c.l.b16 %v1399
    %v1656 = vunpack.c.l.b16 %v1400
    %v1657 = vunpack.c.l.b16 %v1401
    %v1658 = vunpack.c.l.b16 %v1402
    %v1659 = vunpack.c.l.b16 %v1403
    %v1660 = vunpack.c.l.b16 %v1404
    %v1661 = vunpack.c.l.b16 %v1405
    %v1662 = vunpack.c.l.b16 %v1406
    %v1663 = vunpack.c.l.b16 %v1407
    %v1664 = vunpack.c.l.b16 %v1408
    %v1665 = vunpack.c.l.b16 %v1409
    %v1666 = vunpack.c.l.b16 %v1410
    %v1667 = vunpack.c.l.b16 %v1411
    %v1668 = vunpack.c.l.b16 %v1412
    %v1669 = vunpack.c.l.b16 %v1413
    %v1670 = vunpack.c.l.b16 %v1414
    %v1671 = vunpack.c.l.b16 %v1415
    %v1672 = vunpack.c.l.b16 %v1416
    %v1673 = vunpack.c.l.b16 %v1417
    %v1674 = vunpack.c.l.b16 %v1418
    %v1675 = vunpack.c.l.b16 %v1419
    %v1676 = vunpack.c.l.b16 %v1420
    %v1677 = vunpack.c.l.b16 %v1421
    %v1678 = vunpack.c.l.b16 %v1422
    %v1679 = vunpack.c.l.b16 %v1423
    %v1680 = vunpack.c.l.b16 %v1424
    %v1681 = vunpack.c.l.b16 %v1425
    %v1682 = vunpack.c.l.b16 %v1426
    %v1683 = vunpack.c.l.b16 %v1427
    %v1684 = vunpack.c.l.b16 %v1428
    %v1685 = vunpack.c.l.b16 %v1429
    %v1686 = vunpack.c.l.b16 %v1430
    %v1687 = vunpack.c.l.b16 %v1431
    %v1688 = vunpack.c.l.b16 %v1432
    %v1689 = vunpack.c.l.b16 %v1433
    %v1690 = vunpack.c.l.b16 %v1434
    %v1691 = vunpack.c.l.b16 %v1435
    %v1692 = vunpack.c.l.b16 %v1436
    %v1693 = vunpack.c.l.b16 %v1437
    %v1694 = vunpack.c.l.b16 %v1438
    %v1695 = vunpack.c.l.b16 %v1439
    %v1696 = vunpack.c.l.b16 %v1440
    %v1697 = vunpack.c.l.b16 %v1441
    %v1698 = vunpack.c.l.b16 %v1442
    %v1699 = vunpack.c.l.b16 %v1443
    %v1700 = vunpack.c.l.b16 %v1444
    %v1701 = vunpack.c.l.b16 %v1445
    %v1702 = vunpack.c.l.b16 %v1446
    %v1703 = vunpack.c.l.b16 %v1447
    %v1704 = vunpack.c.l.b16 %v1448
    %v1705 = vunpack.c.l.b16 %v1449
    %v1706 = vunpack.c.l.b16 %v1450
    %v1707 = vunpack.c.l.b16 %v1451
    %v1708 = vunpack.c.l.b16 %v1452
    %v1709 = vunpack.c.l.b16 %v1453
    %v1710 = vunpack.c.l.b16 %v1454
    %v1711 = vunpack.c.l.b16 %v1455
    %v1712 = vunpack.c.l.b16 %v1456
    %v1713 = vunpack.c.l.b16 %v1457
    %v1714 = vunpack.c.l.b16 %v1458
    %v1715 = vunpack.c.l.b16 %v1459
    %v1716 = vunpack.c.l.b16 %v1460
    %v1717 = vunpack.c.l.b16 %v1461
    %v1718 = vunpack.c.l.b16 %v1462
    %v1719 = vunpack.c.l.b16 %v1463
    %v1720 = vunpack.c.l.b16 %v1464
    %v1721 = vunpack.c.l.b16 %v1465
    %v1722 = vunpack.c.l.b16 %v1466
    %v1723 = vunpack.c.l.b16 %v1467
    %v1724 = vunpack.c.l.b16 %v1468
    %v1725 = vunpack.c.l.b16 %v1469
    %v1726 = vunpack.c.l.b16 %v1470
    %v1727 = vunpack.c.l.b16 %v1471
    %v1728 = vunpack.c.l.b16 %v1472
    %v1729 = vunpack.c.l.b16 %v1473
    %v1730 = vunpack.c.l.b16 %v1474
    %v1731 = vunpack.c.l.b16 %v1475
    %v1732 = vunpack.c.l.b16 %v1476
    %v1733 = vunpack.c.l.b16 %v1477
    %v1734 = vunpack.c.l.b16 %v1478
    %v1735 = vunpack.c.l.b16 %v1479
    %v1736 = vunpack.c.l.b16 %v1480
    %v1737 = vunpack.c.l.b16 %v1481
    %v1738 = vunpack.c.l.b16 %v1482
    %v1739 = vunpack.c.l.b16 %v1483
    %v1740 = vunpack.c.l.b16 %v1484
    %v1741 = vunpack.c.l.b16 %v1485
    %v1742 = vunpack.c.l.b16 %v1486
    %v1743 = vunpack.c.l.b16 %v1487
    %v1744 = vunpack.c.l.b16 %v1488
    %v1745 = vunpack.c.l.b16 %v1489
    %v1746 = vunpack.c.l.b16 %v1490
    %v1747 = vpack.c.b16 %v1620, %v1619
    %v1748 = vpack.c.b16 %v1622, %v1621
    %v1749 = vpack.c.b16 %v1624, %v1623
    %v1750 = vpack.c.b16 %v1626, %v1625
    %v1751 = vpack.c.b16 %v1628, %v1627
    %v1752 = vpack.c.b16 %v1630, %v1629
    %v1753 = vpack.c.b16 %v1632, %v1631
    %v1754 = vpack.c.b16 %v1634, %v1633
    %v1755 = vpack.c.b16 %v1636, %v1635
    %v1756 = vpack.c.b16 %v1638, %v1637
    %v1757 = vpack.c.b16 %v1640, %v1639
    %v1758 = vpack.c.b16 %v1642, %v1641
    %v1759 = vpack.c.b16 %v1644, %v1643
    %v1760 = vpack.c.b16 %v1646, %v1645
    %v1761 = vpack.c.b16 %v1648, %v1647
    %v1762 = vpack.c.b16 %v1650, %v1649
    %v1763 = vpack.c.b16 %v1652, %v1651
    %v1764 = vpack.c.b16 %v1654, %v1653
    %v1765 = vpack.c.b16 %v1656, %v1655
    %v1766 = vpack.c.b16 %v1658, %v1657
    %v1767 = vpack.c.b16 %v1660, %v1659
    %v1768 = vpack.c.b16 %v1662, %v1661
    %v1769 = vpack.c.b16 %v1664, %v1663
    %v1770 = vpack.c.b16 %v1666, %v1665
    %v1771 = vpack.c.b16 %v1668, %v1667
    %v1772 = vpack.c.b16 %v1670, %v1669
    %v1773 = vpack.c.b16 %v1672, %v1671
    %v1774 = vpack.c.b16 %v1674, %v1673
    %v1775 = vpack.c.b16 %v1676, %v1675
    %v1776 = vpack.c.b16 %v1678, %v1677
    %v1777 = vpack.c.b16 %v1680, %v1679
    %v1778 = vpack.c.b16 %v1682, %v1681
    %v1779 = vpack.c.b16 %v1684, %v1683
    %v1780 = vpack.c.b16 %v1686, %v1685
    %v1781 = vpack.c.b16 %v1688, %v1687
    %v1782 = vpack.c.b16 %v1690, %v1689
    %v1783 = vpack.c.b16 %v1692, %v1691
    %v1784 = vpack.c.b16 %v1694, %v1693
    %v1785 = vpack.c.b16 %v1696, %v1695
    %v1786 = vpack.c.b16 %v1698, %v1697
    %v1787 = vpack.c.b16 %v1700, %v1699
    %v1788 = vpack.c.b16 %v1702, %v1701
    %v1789 = vpack.c.b16 %v1704, %v1703
    %v1790 = vpack.c.b16 %v1706, %v1705
    %v1791 = vpack.c.b16 %v1708, %v1707
    %v1792 = vpack.c.b16 %v1710, %v1709
    %v1793 = vpack.c.b16 %v1712, %v1711
    %v1794 = vpack.c.b16 %v1714, %v1713
    %v1795 = vpack.c.b16 %v1716, %v1715
    %v1796 = vpack.c.b16 %v1718, %v1717
    %v1797 = vpack.c.b16 %v1720, %v1719
    %v1798 = vpack.c.b16 %v1722, %v1721
    %v1799 = vpack.c.b16 %v1724, %v1723
    %v1800 = vpack.c.b16 %v1726, %v1725
    %v1801 = vpack.c.b16 %v1728, %v1727
    %v1802 = vpack.c.b16 %v1730, %v1729
    %v1803 = vpack.c.b16 %v1732, %v1731
    %v1804 = vpack.c.b16 %v1734, %v1733
    %v1805 = vpack.c.b16 %v1736, %v1735
    %v1806 = vpack.c.b16 %v1738, %v1737
    %v1807 = vpack.c.b16 %v1740, %v1739
    %v1808 = vpack.c.b16 %v1742, %v1741
    %v1809 = vpack.c.b16 %v1744, %v1743
    %v1810 = vpack.c.b16 %v1746, %v1745
    %1875 = vmatprep.subr.bf16.mxu0 0
    %1876 = vmatpush1.bf16.msra.mxu0 %v1747
    %1877 = vmatprep.subr.bf16.mxu0 0
    %1878 = vmatpush1.bf16.msra.mxu0 %v1748
    %1879 = vmatprep.subr.bf16.mxu0 0
    %1880 = vmatpush1.bf16.msra.mxu0 %v1749
    %1881 = vmatprep.subr.bf16.mxu0 0
    %1882 = vmatpush1.bf16.msra.mxu0 %v1750
    %1883 = vmatprep.subr.bf16.mxu0 0
    %1884 = vmatpush1.bf16.msra.mxu0 %v1751
    %1885 = vmatprep.subr.bf16.mxu0 0
    %1886 = vmatpush1.bf16.msra.mxu0 %v1752
    %1887 = vmatprep.subr.bf16.mxu0 0
    %1888 = vmatpush1.bf16.msra.mxu0 %v1753
    %1889 = vmatprep.subr.bf16.mxu0 0
    %1890 = vmatpush1.bf16.msra.mxu0 %v1754
    %1891 = vmatprep.subr.bf16.mxu0 0
    %1892 = vmatpush1.bf16.msra.mxu0 %v1755
    %1893 = vmatprep.subr.bf16.mxu0 0
    %1894 = vmatpush1.bf16.msra.mxu0 %v1756
    %1895 = vmatprep.subr.bf16.mxu0 0
    %1896 = vmatpush1.bf16.msra.mxu0 %v1757
    %1897 = vmatprep.subr.bf16.mxu0 0
    %1898 = vmatpush1.bf16.msra.mxu0 %v1758
    %1899 = vmatprep.subr.bf16.mxu0 0
    %1900 = vmatpush1.bf16.msra.mxu0 %v1759
    %1901 = vmatprep.subr.bf16.mxu0 0
    %1902 = vmatpush1.bf16.msra.mxu0 %v1760
    %1903 = vmatprep.subr.bf16.mxu0 0
    %1904 = vmatpush1.bf16.msra.mxu0 %v1761
    %1905 = vmatprep.subr.bf16.mxu0 0
    %1906 = vmatpush1.bf16.msra.mxu0 %v1762
    %1907 = vmatprep.mubr.bf16.mxu0 %v1356
    %1908 = vmatmul.mubr.bf16.gmra.mrb[0].mxu0 %v1355
    %v1909 = vpop.f32.mrb[0].mxu0
    %v1910 = vadd.f32 %v1333, %v1909
    %v1911 = vpop.f32.mrb[0].mxu0
    %v1912 = vpop.f32.mrb[0].mxu0
    %v1913 = vadd.f32 %v1336, %v1912
    %v1914 = vpop.f32.mrb[0].mxu0
    %1915 = vdwg.mxu0
    %1916 = vmatprep.subr.bf16.mxu0 0
    %1917 = vmatpush1.bf16.msra.mxu0 %v1763
    %1918 = vmatprep.subr.bf16.mxu0 0
    %1919 = vmatpush1.bf16.msra.mxu0 %v1764
    %1920 = vmatprep.subr.bf16.mxu0 0
    %1921 = vmatpush1.bf16.msra.mxu0 %v1765
    %1922 = vmatprep.subr.bf16.mxu0 0
    %1923 = vmatpush1.bf16.msra.mxu0 %v1766
    %1924 = vmatprep.subr.bf16.mxu0 0
    %1925 = vmatpush1.bf16.msra.mxu0 %v1767
    %1926 = vmatprep.subr.bf16.mxu0 0
    %1927 = vmatpush1.bf16.msra.mxu0 %v1768
    %1928 = vmatprep.subr.bf16.mxu0 0
    %1929 = vmatpush1.bf16.msra.mxu0 %v1769
    %1930 = vmatprep.subr.bf16.mxu0 0
    %1931 = vmatpush1.bf16.msra.mxu0 %v1770
    %1932 = vmatprep.subr.bf16.mxu0 0
    %1933 = vmatpush1.bf16.msra.mxu0 %v1771
    %1934 = vmatprep.subr.bf16.mxu0 0
    %1935 = vmatpush1.bf16.msra.mxu0 %v1772
    %1936 = vmatprep.subr.bf16.mxu0 0
    %1937 = vmatpush1.bf16.msra.mxu0 %v1773
    %1938 = vmatprep.subr.bf16.mxu0 0
    %1939 = vmatpush1.bf16.msra.mxu0 %v1774
    %1940 = vmatprep.subr.bf16.mxu0 0
    %1941 = vmatpush1.bf16.msra.mxu0 %v1775
    %1942 = vmatprep.subr.bf16.mxu0 0
    %1943 = vmatpush1.bf16.msra.mxu0 %v1776
    %1944 = vmatprep.subr.bf16.mxu0 0
    %1945 = vmatpush1.bf16.msra.mxu0 %v1777
    %1946 = vmatprep.subr.bf16.mxu0 0
    %1947 = vmatpush1.bf16.msra.mxu0 %v1778
    %1948 = vmatprep.mubr.bf16.mxu0 %v1358
    %1949 = vmatmul.mubr.bf16.gmra.mrb[0].mxu0 %v1357
    %v1950 = vpop.f32.mrb[0].mxu0
    %v1951 = vadd.f32 %v1910, %v1950
    %v1952 = vpop.f32.mrb[0].mxu0
    %v1953 = vpop.f32.mrb[0].mxu0
    %v1954 = vadd.f32 %v1913, %v1953
    %v1955 = vpop.f32.mrb[0].mxu0
    %1956 = vdwg.mxu0
    %1957 = vmatprep.subr.bf16.mxu0 0
    %1958 = vmatpush1.bf16.msra.mxu0 %v1779
    %1959 = vmatprep.subr.bf16.mxu0 0
    %1960 = vmatpush1.bf16.msra.mxu0 %v1780
    %1961 = vmatprep.subr.bf16.mxu0 0
    %1962 = vmatpush1.bf16.msra.mxu0 %v1781
    %1963 = vmatprep.subr.bf16.mxu0 0
    %1964 = vmatpush1.bf16.msra.mxu0 %v1782
    %1965 = vmatprep.subr.bf16.mxu0 0
    %1966 = vmatpush1.bf16.msra.mxu0 %v1783
    %1967 = vmatprep.subr.bf16.mxu0 0
    %1968 = vmatpush1.bf16.msra.mxu0 %v1784
    %1969 = vmatprep.subr.bf16.mxu0 0
    %1970 = vmatpush1.bf16.msra.mxu0 %v1785
    %1971 = vmatprep.subr.bf16.mxu0 0
    %1972 = vmatpush1.bf16.msra.mxu0 %v1786
    %1973 = vmatprep.subr.bf16.mxu0 0
    %1974 = vmatpush1.bf16.msra.mxu0 %v1787
    %1975 = vmatprep.subr.bf16.mxu0 0
    %1976 = vmatpush1.bf16.msra.mxu0 %v1788
    %1977 = vmatprep.subr.bf16.mxu0 0
    %1978 = vmatpush1.bf16.msra.mxu0 %v1789
    %1979 = vmatprep.subr.bf16.mxu0 0
    %1980 = vmatpush1.bf16.msra.mxu0 %v1790
    %1981 = vmatprep.subr.bf16.mxu0 0
    %1982 = vmatpush1.bf16.msra.mxu0 %v1791
    %1983 = vmatprep.subr.bf16.mxu0 0
    %1984 = vmatpush1.bf16.msra.mxu0 %v1792
    %1985 = vmatprep.subr.bf16.mxu0 0
    %1986 = vmatpush1.bf16.msra.mxu0 %v1793
    %1987 = vmatprep.subr.bf16.mxu0 0
    %1988 = vmatpush1.bf16.msra.mxu0 %v1794
    %1989 = vmatprep.mubr.bf16.mxu0 %v1360
    %1990 = vmatmul.mubr.bf16.gmra.mrb[0].mxu0 %v1359
    %v1991 = vpop.f32.mrb[0].mxu0
    %v1992 = vadd.f32 %v1951, %v1991
    %v1993 = vpop.f32.mrb[0].mxu0
    %v1994 = vpop.f32.mrb[0].mxu0
    %v1995 = vadd.f32 %v1954, %v1994
    %v1996 = vpop.f32.mrb[0].mxu0
    %1997 = vdwg.mxu0
    %1998 = vmatprep.subr.bf16.mxu0 0
    %1999 = vmatpush1.bf16.msra.mxu0 %v1795
    %2000 = vmatprep.subr.bf16.mxu0 0
    %2001 = vmatpush1.bf16.msra.mxu0 %v1796
    %2002 = vmatprep.subr.bf16.mxu0 0
    %2003 = vmatpush1.bf16.msra.mxu0 %v1797
    %2004 = vmatprep.subr.bf16.mxu0 0
    %2005 = vmatpush1.bf16.msra.mxu0 %v1798
    %2006 = vmatprep.subr.bf16.mxu0 0
    %2007 = vmatpush1.bf16.msra.mxu0 %v1799
    %2008 = vmatprep.subr.bf16.mxu0 0
    %2009 = vmatpush1.bf16.msra.mxu0 %v1800
    %2010 = vmatprep.subr.bf16.mxu0 0
    %2011 = vmatpush1.bf16.msra.mxu0 %v1801
    %2012 = vmatprep.subr.bf16.mxu0 0
    %2013 = vmatpush1.bf16.msra.mxu0 %v1802
    %2014 = vmatprep.subr.bf16.mxu0 0
    %2015 = vmatpush1.bf16.msra.mxu0 %v1803
    %2016 = vmatprep.subr.bf16.mxu0 0
    %2017 = vmatpush1.bf16.msra.mxu0 %v1804
    %2018 = vmatprep.subr.bf16.mxu0 0
    %2019 = vmatpush1.bf16.msra.mxu0 %v1805
    %2020 = vmatprep.subr.bf16.mxu0 0
    %2021 = vmatpush1.bf16.msra.mxu0 %v1806
    %2022 = vmatprep.subr.bf16.mxu0 0
    %2023 = vmatpush1.bf16.msra.mxu0 %v1807
    %2024 = vmatprep.subr.bf16.mxu0 0
    %2025 = vmatpush1.bf16.msra.mxu0 %v1808
    %2026 = vmatprep.subr.bf16.mxu0 0
    %2027 = vmatpush1.bf16.msra.mxu0 %v1809
    %2028 = vmatprep.subr.bf16.mxu0 0
    %2029 = vmatpush1.bf16.msra.mxu0 %v1810
    %2030 = vmatprep.mubr.bf16.mxu0 %v1362
    %2031 = vmatmul.mubr.bf16.gmra.mrb[0].mxu0 %v1361
    %v2032 = vpop.f32.mrb[0].mxu0
    %v2033 = vadd.f32 %v1992, %v2032
    %v2034 = vpop.f32.mrb[0].mxu0
    %v2035 = vpop.f32.mrb[0].mxu0
    %v2036 = vadd.f32 %v1995, %v2035
    %v2037 = vpop.f32.mrb[0].mxu0
    %2038 = vdwg.mxu0
    %2039 = vst.msk [vmem:[#allocation2] sm:$0xff] %vm34, %v2033
    %2040 = vst.msk [vmem:[#allocation2 + $0x8] sm:$0xff] %vm34, %v2036
    // Predicated region
    $region26: #{tpu_custom_call.1} parent=1 // pred_check
      _
    $region27: #{tpu_custom_call.1} parent=1 // pred_check_branch
      %2042 = sbr.rel (0) target = $region29
    $region28: #{tpu_custom_call.1} parent=1 // pred_region
      %s2044 = ssub.s32 256, 256
      %2045 = vsyncadd [#allocation3], %s2044
      %s2046 = sshll.u32 [#allocation2], 4
      %s2047 = int_to_ptr.vmem [resolvable:$true] %s2046
      %2052 = dma.vmem_to_hbm [thread:$0]  %s2047, 256, %s6, [#allocation3], 128, 128, 8
    $region29: #{tpu_custom_call.1} parent=1 // pred_fallthru
      _
    // Predicated region
    $region30: #{tpu_custom_call.1} parent=1 // pred_check
      _
    $region31: #{tpu_custom_call.1} parent=1 // pred_check_branch
      %2054 = sbr.rel (0) target = $region33
    $region32: #{tpu_custom_call.1} parent=1 // pred_region
      %s2056 = ssub.s32 16, 16
      %2057 = vsyncadd [#allocation4], %s2056
      %2060 = dma.smem_to_hbm [#allocation5], 16, %s7, [#allocation4]
    $region33: #{tpu_custom_call.1} parent=1 // pred_fallthru
      _
    // Predicated region
    $region34: #{tpu_custom_call.1} parent=1 // pred_check
      _
    $region35: #{tpu_custom_call.1} parent=1 // pred_check_branch
      %2062 = sbr.rel (0) target = $region37
    $region36: #{tpu_custom_call.1} parent=1 // pred_region
      %2063 = dma.done [#allocation3], 256
    $region37: #{tpu_custom_call.1} parent=1 // pred_fallthru
      _
    // Predicated region
    $region38: #{tpu_custom_call.1} parent=1 // pred_check
      _
    $region39: #{tpu_custom_call.1} parent=1 // pred_check_branch
      %2065 = sbr.rel (0) target = $region41
    $region40: #{tpu_custom_call.1} parent=1 // pred_region
      %2066 = dma.done [#allocation4], 16
    $region41: #{tpu_custom_call.1} parent=1 // pred_fallthru
      _
    %2067 = sfence
    %2068 = vsyncpa [#allocation3], 1
    %2069 = vsyncpa [#allocation4], 1

</llo_original>
